<compile_context>
chip_gen: v6e
topology: v6e:2x2x1
jax: 0.10.0
libtpu: 0.0.40
codegen_flags: <defaults>
</compile_context>

<pallas_src>
import functools

import jax
import jax.numpy as jnp
import numpy as np
from jax.experimental import pallas as pl
from jax.experimental.pallas import tpu as pltpu


# ------------------------------ Pallas kernel --------------------------------
def _fused_backbone_kernel(x0_ref, x1_ref, x2_ref,
                           w3_ref, w4_ref, w5_ref, w6_ref,
                           bias_ref,
                           o0_ref, o1_ref, o2_ref, o3_ref,
                           *, c6_taps):
    """One grid step == one batch element. hidden on sublanes, pixels on lanes."""
    x0 = x0_ref[0]                      # (C3, H0*W0) bf16
    x1 = x1_ref[0]                      # (C4, H1*W1) bf16
    x2 = x2_ref[0]                      # (C5, H2*W2) bf16

    b3 = bias_ref[:, 0:1]               # (HID, 1) f32 (static slices of one DMA)
    b4 = bias_ref[:, 1:2]
    b5 = bias_ref[:, 2:3]
    b6 = bias_ref[:, 3:4]

    # 1x1 lateral convs: (hidden, C) @ (C, H*W) + bias, f32 accumulation.
    o0_ref[0] = (jnp.dot(w3_ref[...], x0, preferred_element_type=jnp.float32)
                 + b3).astype(o0_ref.dtype)
    o1_ref[0] = (jnp.dot(w4_ref[...], x1, preferred_element_type=jnp.float32)
                 + b4).astype(o1_ref.dtype)
    o2_ref[0] = (jnp.dot(w5_ref[...], x2, preferred_element_type=jnp.float32)
                 + b5).astype(o2_ref.dtype)

    # 3x3 stride-2 conv on the deepest level (single output pixel here):
    # accumulate the nine taps as (hidden, C) @ (C, 1) matvecs directly from
    # the level-'2' tile already resident in VMEM (no im2col).
    acc = b6                            # (HID, 1) f32
    for t, col in enumerate(c6_taps):   # static, fully unrolled
        acc = acc + jnp.dot(w6_ref[t], x2[:, col:col + 1],
                            preferred_element_type=jnp.float32)
    o3_ref[0] = acc.astype(o3_ref.dtype)


# --------------------------- mask nearest-resize ------------------------------
def interpolate_mask_nearest(m, out_h, out_w):
    """F.interpolate(mode='nearest') on a (N, H, W) bool mask (tiny; kept in XLA)."""
    N, H, W = m.shape
    hi = (jnp.arange(out_h) * H) // out_h
    wi = (jnp.arange(out_w) * W) // out_w
    return m[:, hi][:, :, wi]


# --------------------------- BackboneBase.forward -----------------------------
def backbone_base_forward(xs, mask, params, *, compute_dtype=jnp.bfloat16):
    """xs: dict '0'/'1'/'2' -> NCHW features; mask: (N, H_img, W_img) bool."""
    x0, x1, x2 = xs["0"], xs["1"], xs["2"]
    N, C3, H0, W0 = x0.shape
    _, C4, H1, W1 = x1.shape
    _, C5, H2, W2 = x2.shape
    HID = params["c3_b"].shape[0]

    # c6 = VALID 3x3 stride-2 conv; with the deepest map at 4x4 its output is a
    # single pixel, which lets the nine taps be folded into the fused kernel.
    # TODO(synk): larger c5 maps (c6 output > 1x1) would need an im2col grid axis.
    Ho = (H2 - 3) // 2 + 1
    Wo = (W2 - 3) // 2 + 1
    assert Ho == 1 and Wo == 1, "fused c6 path assumes a 1x1 c6 output"
    c6_taps = tuple(i * W2 + j for i in range(3) for j in range(3))

    # Free reshapes of contiguous NCHW tensors; bf16 halves HBM/VMEM traffic.
    x0m = x0.reshape(N, C3, H0 * W0).astype(compute_dtype)
    x1m = x1.reshape(N, C4, H1 * W1).astype(compute_dtype)
    x2m = x2.reshape(N, C5, H2 * W2).astype(compute_dtype)

    w3 = params["c3_w"].reshape(HID, C3).astype(compute_dtype)
    w4 = params["c4_w"].reshape(HID, C4).astype(compute_dtype)
    w5 = params["c5_w"].reshape(HID, C5).astype(compute_dtype)
    # (HID, C5, 3, 3) -> (9, HID, C5): tap t = 3*i + j selects w[:, :, i, j].
    w6 = params["c6_w"].transpose(2, 3, 0, 1).reshape(9, HID, C5).astype(compute_dtype)

    # Pack the four biases into one (HID, 4) f32 array: one DMA instead of four.
    bias = jnp.stack(
        [params["c3_b"], params["c4_b"], params["c5_b"], params["c6_b"]],
        axis=1,
    ).astype(jnp.float32)

    kernel = functools.partial(_fused_backbone_kernel, c6_taps=c6_taps)

    out0, out1, out2, out3 = pl.pallas_call(
        kernel,
        out_shape=(
            jax.ShapeDtypeStruct((N, HID, H0 * W0), jnp.float32),
            jax.ShapeDtypeStruct((N, HID, H1 * W1), jnp.float32),
            jax.ShapeDtypeStruct((N, HID, H2 * W2), jnp.float32),
            jax.ShapeDtypeStruct((N, HID, 1), jnp.float32),
        ),
        grid=(N,),
        in_specs=[
            pl.BlockSpec((1, C3, H0 * W0), lambda n: (n, 0, 0)),
            pl.BlockSpec((1, C4, H1 * W1), lambda n: (n, 0, 0)),
            pl.BlockSpec((1, C5, H2 * W2), lambda n: (n, 0, 0)),
            pl.BlockSpec((HID, C3), lambda n: (0, 0)),
            pl.BlockSpec((HID, C4), lambda n: (0, 0)),
            pl.BlockSpec((HID, C5), lambda n: (0, 0)),
            pl.BlockSpec((9, HID, C5), lambda n: (0, 0, 0)),
            pl.BlockSpec((HID, 4), lambda n: (0, 0)),
        ],
        out_specs=(
            pl.BlockSpec((1, HID, H0 * W0), lambda n: (n, 0, 0)),
            pl.BlockSpec((1, HID, H1 * W1), lambda n: (n, 0, 0)),
            pl.BlockSpec((1, HID, H2 * W2), lambda n: (n, 0, 0)),
            pl.BlockSpec((1, HID, 1), lambda n: (n, 0, 0)),
        ),
        compiler_params=pltpu.CompilerParams(
            dimension_semantics=("parallel",)),
    )(x0m, x1m, x2m, w3, w4, w5, w6, bias)

    # Free reshapes back to NCHW (exact shapes; no padding to slice off).
    f0 = out0.reshape(N, HID, H0, W0)
    f1 = out1.reshape(N, HID, H1, W1)
    f2 = out2.reshape(N, HID, H2, W2)
    f3 = out3.reshape(N, HID, Ho, Wo)

    out = {
        "0": (f0, interpolate_mask_nearest(mask, H0, W0)),
        "1": (f1, interpolate_mask_nearest(mask, H1, W1)),
        "2": (f2, interpolate_mask_nearest(mask, H2, W2)),
        "3": (f3, interpolate_mask_nearest(mask, Ho, Wo)),
    }
    return out


# ------------------------------- reference -----------------------------------
def _ref_conv(x, w, b, stride, compute_dtype=jnp.bfloat16):
    """XLA conv reference with the same bf16-input / f32-accumulate precision."""
    y = jax.lax.conv_general_dilated(
        x.astype(compute_dtype), w.astype(compute_dtype),
        (stride, stride), "VALID",
        dimension_numbers=("NCHW", "OIHW", "NCHW"),
        preferred_element_type=jnp.float32,
    )
    return y + b.reshape(1, -1, 1, 1).astype(jnp.float32)


if __name__ == "__main__":
    key = jax.random.PRNGKey(0)
    ks = jax.random.split(key, 16)

    # Synthetic small config: inplanes = 32, hidden_dim = 32.
    inplanes, hidden = 32, 32
    c3_c, c4_c, c5_c = inplanes // 4, inplanes // 2, inplanes  # 8, 16, 32
    N = 2

    # Backbone intermediate feature maps (strides 8/16/32 of a 128x128 image).
    xs = {
        "0": jax.random.normal(ks[0], (N, c3_c, 16, 16), jnp.float32),
        "1": jax.random.normal(ks[1], (N, c4_c, 8, 8), jnp.float32),
        "2": jax.random.normal(ks[2], (N, c5_c, 4, 4), jnp.float32),
    }
    mask = jax.random.bernoulli(ks[3], 0.3, (N, 128, 128))

    # Deterministic conv parameters (shapes from __init__).
    params = {
        "c3_w": jax.random.normal(ks[4], (hidden, c3_c, 1, 1), jnp.float32) * 0.1,
        "c3_b": jax.random.normal(ks[5], (hidden,), jnp.float32) * 0.1,
        "c4_w": jax.random.normal(ks[6], (hidden, c4_c, 1, 1), jnp.float32) * 0.1,
        "c4_b": jax.random.normal(ks[7], (hidden,), jnp.float32) * 0.1,
        "c5_w": jax.random.normal(ks[8], (hidden, c5_c, 1, 1), jnp.float32) * 0.1,
        "c5_b": jax.random.normal(ks[9], (hidden,), jnp.float32) * 0.1,
        "c6_w": jax.random.normal(ks[10], (hidden, c5_c, 3, 3), jnp.float32) * 0.1,
        "c6_b": jax.random.normal(ks[11], (hidden,), jnp.float32) * 0.1,
    }

    fwd = jax.jit(backbone_base_forward)
    out = fwd(xs, mask, params)
    for name in ("0", "1", "2", "3"):
        jax.block_until_ready(out[name][0])
        jax.block_until_ready(out[name][1])

    # Correctness check vs XLA convs at the same (bf16 in / f32 acc) precision.
    refs = {
        "0": _ref_conv(xs["0"], params["c3_w"], params["c3_b"], 1),
        "1": _ref_conv(xs["1"], params["c4_w"], params["c4_b"], 1),
        "2": _ref_conv(xs["2"], params["c5_w"], params["c5_b"], 1),
        "3": _ref_conv(xs["2"], params["c6_w"], params["c6_b"], 2),
    }
    for name in ("0", "1", "2", "3"):
        feat, msk = out[name]
        np.testing.assert_allclose(
            np.asarray(feat), np.asarray(refs[name]), rtol=1e-3, atol=1e-3
        )
        assert msk.dtype == jnp.bool_
        assert msk.shape == (N,) + feat.shape[-2:]
        sh = mask.shape[1] // feat.shape[-2]
        sw = mask.shape[2] // feat.shape[-1]
        np.testing.assert_array_equal(
            np.asarray(msk), np.asarray(mask[:, ::sh, ::sw])
        )

    print("KERNEL_OK")
</pallas_src>

<mosaic_0001>
module attributes {stable_mosaic.version = 11 : i64} {
  func.func @_fused_backbone_kernel(%arg0: i32, %arg1: memref<1x8x256xbf16, #tpu.memory_space<vmem>>, %arg2: memref<1x16x64xbf16, #tpu.memory_space<vmem>>, %arg3: memref<1x32x16xbf16, #tpu.memory_space<vmem>>, %arg4: memref<32x8xbf16, #tpu.memory_space<vmem>>, %arg5: memref<32x16xbf16, #tpu.memory_space<vmem>>, %arg6: memref<32x32xbf16, #tpu.memory_space<vmem>>, %arg7: memref<9x32x32xbf16, #tpu.memory_space<vmem>>, %arg8: memref<32x4xf32, #tpu.memory_space<vmem>>, %arg9: memref<1x32x256xf32, #tpu.memory_space<vmem>>, %arg10: memref<1x32x64xf32, #tpu.memory_space<vmem>>, %arg11: memref<1x32x16xf32, #tpu.memory_space<vmem>>, %arg12: memref<1x32x1xf32, #tpu.memory_space<vmem>>) attributes {dimension_semantics = [#tpu.dimension_semantics<parallel>], iteration_bounds = array<i64: 2>, scalar_prefetch = 0 : i64, scratch_operands = 0 : i64, tpu.core_type = #tpu.core_type<tc>, window_params = [{transform_indices = @transform_0, window_bounds = array<i64: 1, 8, 256>}, {transform_indices = @transform_1, window_bounds = array<i64: 1, 16, 64>}, {transform_indices = @transform_2, window_bounds = array<i64: 1, 32, 16>}, {pipeline_mode = #tpu.pipeline_mode<synchronous>, transform_indices = @transform_3, window_bounds = array<i64: 32, 8>}, {pipeline_mode = #tpu.pipeline_mode<synchronous>, transform_indices = @transform_4, window_bounds = array<i64: 32, 16>}, {pipeline_mode = #tpu.pipeline_mode<synchronous>, transform_indices = @transform_5, window_bounds = array<i64: 32, 32>}, {pipeline_mode = #tpu.pipeline_mode<synchronous>, transform_indices = @transform_6, window_bounds = array<i64: 9, 32, 32>}, {pipeline_mode = #tpu.pipeline_mode<synchronous>, transform_indices = @transform_7, window_bounds = array<i64: 32, 4>}, {transform_indices = @transform_8, window_bounds = array<i64: 1, 32, 256>}, {transform_indices = @transform_9, window_bounds = array<i64: 1, 32, 64>}, {transform_indices = @transform_10, window_bounds = array<i64: 1, 32, 16>}, {transform_indices = @transform_11, window_bounds = array<i64: 1, 32, 1>}]} {
    %c0 = arith.constant 0 : index
    %c0_0 = arith.constant 0 : index
    %c0_1 = arith.constant 0 : index
    %0 = vector.load %arg1[%c0, %c0_0, %c0_1] : memref<1x8x256xbf16, #tpu.memory_space<vmem>>, vector<1x8x256xbf16>
    %1 = vector.shape_cast %0 : vector<1x8x256xbf16> to vector<8x256xbf16>
    %c0_2 = arith.constant 0 : index
    %c0_3 = arith.constant 0 : index
    %c0_4 = arith.constant 0 : index
    %2 = vector.load %arg2[%c0_2, %c0_3, %c0_4] : memref<1x16x64xbf16, #tpu.memory_space<vmem>>, vector<1x16x64xbf16>
    %3 = vector.shape_cast %2 : vector<1x16x64xbf16> to vector<16x64xbf16>
    %c0_5 = arith.constant 0 : index
    %c0_6 = arith.constant 0 : index
    %c0_7 = arith.constant 0 : index
    %4 = vector.load %arg3[%c0_5, %c0_6, %c0_7] : memref<1x32x16xbf16, #tpu.memory_space<vmem>>, vector<1x32x16xbf16>
    %5 = vector.shape_cast %4 : vector<1x32x16xbf16> to vector<32x16xbf16>
    %c0_8 = arith.constant 0 : index
    %c0_9 = arith.constant 0 : index
    %6 = vector.load %arg8[%c0_8, %c0_9] : memref<32x4xf32, #tpu.memory_space<vmem>>, vector<32x1xf32>
    %c0_10 = arith.constant 0 : index
    %c1 = arith.constant 1 : index
    %7 = vector.load %arg8[%c0_10, %c1] : memref<32x4xf32, #tpu.memory_space<vmem>>, vector<32x1xf32>
    %c0_11 = arith.constant 0 : index
    %c2 = arith.constant 2 : index
    %8 = vector.load %arg8[%c0_11, %c2] : memref<32x4xf32, #tpu.memory_space<vmem>>, vector<32x1xf32>
    %c0_12 = arith.constant 0 : index
    %c3 = arith.constant 3 : index
    %9 = vector.load %arg8[%c0_12, %c3] : memref<32x4xf32, #tpu.memory_space<vmem>>, vector<32x1xf32>
    %c0_13 = arith.constant 0 : index
    %c0_14 = arith.constant 0 : index
    %10 = vector.load %arg4[%c0_13, %c0_14] : memref<32x8xbf16, #tpu.memory_space<vmem>>, vector<32x8xbf16>
    %cst = arith.constant dense<0.000000e+00> : vector<32x256xf32>
    %11 = tpu.matmul %10, %1, %cst {dimension_numbers = #tpu.dot_dimension_numbers<[1], [0], [0], [1], [0, 0, 1, 1], [], []>} : vector<32x8xbf16>, vector<8x256xbf16>, vector<32x256xf32> -> vector<32x256xf32>
    %12 = vector.broadcast %6 : vector<32x1xf32> to vector<32x256xf32>
    %13 = arith.addf %11, %12 : vector<32x256xf32>
    %c0_15 = arith.constant 0 : index
    %c0_16 = arith.constant 0 : index
    %c0_17 = arith.constant 0 : index
    %14 = vector.load %arg9[%c0_15, %c0_16, %c0_17] : memref<1x32x256xf32, #tpu.memory_space<vmem>>, vector<1x32x256xf32>
    %15 = vector.shape_cast %14 : vector<1x32x256xf32> to vector<32x256xf32>
    %16 = vector.shape_cast %13 : vector<32x256xf32> to vector<1x32x256xf32>
    tpu.vector_store %arg9[%c0_15, %c0_16, %c0_17], %16 {strides = array<i32>} : memref<1x32x256xf32, #tpu.memory_space<vmem>>, vector<1x32x256xf32>,
    %c0_18 = arith.constant 0 : index
    %c0_19 = arith.constant 0 : index
    %17 = vector.load %arg5[%c0_18, %c0_19] : memref<32x16xbf16, #tpu.memory_space<vmem>>, vector<32x16xbf16>
    %cst_20 = arith.constant dense<0.000000e+00> : vector<32x64xf32>
    %18 = tpu.matmul %17, %3, %cst_20 {dimension_numbers = #tpu.dot_dimension_numbers<[1], [0], [0], [1], [0, 0, 1, 1], [], []>} : vector<32x16xbf16>, vector<16x64xbf16>, vector<32x64xf32> -> vector<32x64xf32>
    %19 = vector.broadcast %7 : vector<32x1xf32> to vector<32x64xf32>
    %20 = arith.addf %18, %19 : vector<32x64xf32>
    %c0_21 = arith.constant 0 : index
    %c0_22 = arith.constant 0 : index
    %c0_23 = arith.constant 0 : index
    %21 = vector.load %arg10[%c0_21, %c0_22, %c0_23] : memref<1x32x64xf32, #tpu.memory_space<vmem>>, vector<1x32x64xf32>
    %22 = vector.shape_cast %21 : vector<1x32x64xf32> to vector<32x64xf32>
    %23 = vector.shape_cast %20 : vector<32x64xf32> to vector<1x32x64xf32>
    tpu.vector_store %arg10[%c0_21, %c0_22, %c0_23], %23 {strides = array<i32>} : memref<1x32x64xf32, #tpu.memory_space<vmem>>, vector<1x32x64xf32>,
    %c0_24 = arith.constant 0 : index
    %c0_25 = arith.constant 0 : index
    %24 = vector.load %arg6[%c0_24, %c0_25] : memref<32x32xbf16, #tpu.memory_space<vmem>>, vector<32x32xbf16>
    %cst_26 = arith.constant dense<0.000000e+00> : vector<32x16xf32>
    %25 = tpu.matmul %24, %5, %cst_26 {dimension_numbers = #tpu.dot_dimension_numbers<[1], [0], [0], [1], [0, 0, 1, 1], [], []>} : vector<32x32xbf16>, vector<32x16xbf16>, vector<32x16xf32> -> vector<32x16xf32>
    %26 = vector.broadcast %8 : vector<32x1xf32> to vector<32x16xf32>
    %27 = arith.addf %25, %26 : vector<32x16xf32>
    %c0_27 = arith.constant 0 : index
    %c0_28 = arith.constant 0 : index
    %c0_29 = arith.constant 0 : index
    %28 = vector.load %arg11[%c0_27, %c0_28, %c0_29] : memref<1x32x16xf32, #tpu.memory_space<vmem>>, vector<1x32x16xf32>
    %29 = vector.shape_cast %28 : vector<1x32x16xf32> to vector<32x16xf32>
    %30 = vector.shape_cast %27 : vector<32x16xf32> to vector<1x32x16xf32>
    tpu.vector_store %arg11[%c0_27, %c0_28, %c0_29], %30 {strides = array<i32>} : memref<1x32x16xf32, #tpu.memory_space<vmem>>, vector<1x32x16xf32>,
    %c0_30 = arith.constant 0 : index
    %c0_31 = arith.constant 0 : index
    %c0_32 = arith.constant 0 : index
    %31 = vector.load %arg7[%c0_30, %c0_31, %c0_32] : memref<9x32x32xbf16, #tpu.memory_space<vmem>>, vector<1x32x32xbf16>
    %32 = vector.shape_cast %31 : vector<1x32x32xbf16> to vector<32x32xbf16>
    %33 = vector.extract_strided_slice %5 {offsets = [0, 0], sizes = [32, 1], strides = [1, 1]} : vector<32x16xbf16> to vector<32x1xbf16>
    %cst_33 = arith.constant dense<0.000000e+00> : vector<32x1xf32>
    %34 = tpu.matmul %32, %33, %cst_33 {dimension_numbers = #tpu.dot_dimension_numbers<[1], [0], [0], [1], [0, 0, 1, 1], [], []>} : vector<32x32xbf16>, vector<32x1xbf16>, vector<32x1xf32> -> vector<32x1xf32>
    %35 = arith.addf %9, %34 : vector<32x1xf32>
    %c1_34 = arith.constant 1 : index
    %c0_35 = arith.constant 0 : index
    %c0_36 = arith.constant 0 : index
    %36 = vector.load %arg7[%c1_34, %c0_35, %c0_36] : memref<9x32x32xbf16, #tpu.memory_space<vmem>>, vector<1x32x32xbf16>
    %37 = vector.shape_cast %36 : vector<1x32x32xbf16> to vector<32x32xbf16>
    %38 = vector.extract_strided_slice %5 {offsets = [0, 1], sizes = [32, 1], strides = [1, 1]} : vector<32x16xbf16> to vector<32x1xbf16>
    %cst_37 = arith.constant dense<0.000000e+00> : vector<32x1xf32>
    %39 = tpu.matmul %37, %38, %cst_37 {dimension_numbers = #tpu.dot_dimension_numbers<[1], [0], [0], [1], [0, 0, 1, 1], [], []>} : vector<32x32xbf16>, vector<32x1xbf16>, vector<32x1xf32> -> vector<32x1xf32>
    %40 = arith.addf %35, %39 : vector<32x1xf32>
    %c2_38 = arith.constant 2 : index
    %c0_39 = arith.constant 0 : index
    %c0_40 = arith.constant 0 : index
    %41 = vector.load %arg7[%c2_38, %c0_39, %c0_40] : memref<9x32x32xbf16, #tpu.memory_space<vmem>>, vector<1x32x32xbf16>
    %42 = vector.shape_cast %41 : vector<1x32x32xbf16> to vector<32x32xbf16>
    %43 = vector.extract_strided_slice %5 {offsets = [0, 2], sizes = [32, 1], strides = [1, 1]} : vector<32x16xbf16> to vector<32x1xbf16>
    %cst_41 = arith.constant dense<0.000000e+00> : vector<32x1xf32>
    %44 = tpu.matmul %42, %43, %cst_41 {dimension_numbers = #tpu.dot_dimension_numbers<[1], [0], [0], [1], [0, 0, 1, 1], [], []>} : vector<32x32xbf16>, vector<32x1xbf16>, vector<32x1xf32> -> vector<32x1xf32>
    %45 = arith.addf %40, %44 : vector<32x1xf32>
    %c3_42 = arith.constant 3 : index
    %c0_43 = arith.constant 0 : index
    %c0_44 = arith.constant 0 : index
    %46 = vector.load %arg7[%c3_42, %c0_43, %c0_44] : memref<9x32x32xbf16, #tpu.memory_space<vmem>>, vector<1x32x32xbf16>
    %47 = vector.shape_cast %46 : vector<1x32x32xbf16> to vector<32x32xbf16>
    %48 = vector.extract_strided_slice %5 {offsets = [0, 4], sizes = [32, 1], strides = [1, 1]} : vector<32x16xbf16> to vector<32x1xbf16>
    %cst_45 = arith.constant dense<0.000000e+00> : vector<32x1xf32>
    %49 = tpu.matmul %47, %48, %cst_45 {dimension_numbers = #tpu.dot_dimension_numbers<[1], [0], [0], [1], [0, 0, 1, 1], [], []>} : vector<32x32xbf16>, vector<32x1xbf16>, vector<32x1xf32> -> vector<32x1xf32>
    %50 = arith.addf %45, %49 : vector<32x1xf32>
    %c4 = arith.constant 4 : index
    %c0_46 = arith.constant 0 : index
    %c0_47 = arith.constant 0 : index
    %51 = vector.load %arg7[%c4, %c0_46, %c0_47] : memref<9x32x32xbf16, #tpu.memory_space<vmem>>, vector<1x32x32xbf16>
    %52 = vector.shape_cast %51 : vector<1x32x32xbf16> to vector<32x32xbf16>
    %53 = vector.extract_strided_slice %5 {offsets = [0, 5], sizes = [32, 1], strides = [1, 1]} : vector<32x16xbf16> to vector<32x1xbf16>
    %cst_48 = arith.constant dense<0.000000e+00> : vector<32x1xf32>
    %54 = tpu.matmul %52, %53, %cst_48 {dimension_numbers = #tpu.dot_dimension_numbers<[1], [0], [0], [1], [0, 0, 1, 1], [], []>} : vector<32x32xbf16>, vector<32x1xbf16>, vector<32x1xf32> -> vector<32x1xf32>
    %55 = arith.addf %50, %54 : vector<32x1xf32>
    %c5 = arith.constant 5 : index
    %c0_49 = arith.constant 0 : index
    %c0_50 = arith.constant 0 : index
    %56 = vector.load %arg7[%c5, %c0_49, %c0_50] : memref<9x32x32xbf16, #tpu.memory_space<vmem>>, vector<1x32x32xbf16>
    %57 = vector.shape_cast %56 : vector<1x32x32xbf16> to vector<32x32xbf16>
    %58 = vector.extract_strided_slice %5 {offsets = [0, 6], sizes = [32, 1], strides = [1, 1]} : vector<32x16xbf16> to vector<32x1xbf16>
    %cst_51 = arith.constant dense<0.000000e+00> : vector<32x1xf32>
    %59 = tpu.matmul %57, %58, %cst_51 {dimension_numbers = #tpu.dot_dimension_numbers<[1], [0], [0], [1], [0, 0, 1, 1], [], []>} : vector<32x32xbf16>, vector<32x1xbf16>, vector<32x1xf32> -> vector<32x1xf32>
    %60 = arith.addf %55, %59 : vector<32x1xf32>
    %c6 = arith.constant 6 : index
    %c0_52 = arith.constant 0 : index
    %c0_53 = arith.constant 0 : index
    %61 = vector.load %arg7[%c6, %c0_52, %c0_53] : memref<9x32x32xbf16, #tpu.memory_space<vmem>>, vector<1x32x32xbf16>
    %62 = vector.shape_cast %61 : vector<1x32x32xbf16> to vector<32x32xbf16>
    %63 = vector.extract_strided_slice %5 {offsets = [0, 8], sizes = [32, 1], strides = [1, 1]} : vector<32x16xbf16> to vector<32x1xbf16>
    %cst_54 = arith.constant dense<0.000000e+00> : vector<32x1xf32>
    %64 = tpu.matmul %62, %63, %cst_54 {dimension_numbers = #tpu.dot_dimension_numbers<[1], [0], [0], [1], [0, 0, 1, 1], [], []>} : vector<32x32xbf16>, vector<32x1xbf16>, vector<32x1xf32> -> vector<32x1xf32>
    %65 = arith.addf %60, %64 : vector<32x1xf32>
    %c7 = arith.constant 7 : index
    %c0_55 = arith.constant 0 : index
    %c0_56 = arith.constant 0 : index
    %66 = vector.load %arg7[%c7, %c0_55, %c0_56] : memref<9x32x32xbf16, #tpu.memory_space<vmem>>, vector<1x32x32xbf16>
    %67 = vector.shape_cast %66 : vector<1x32x32xbf16> to vector<32x32xbf16>
    %68 = vector.extract_strided_slice %5 {offsets = [0, 9], sizes = [32, 1], strides = [1, 1]} : vector<32x16xbf16> to vector<32x1xbf16>
    %cst_57 = arith.constant dense<0.000000e+00> : vector<32x1xf32>
    %69 = tpu.matmul %67, %68, %cst_57 {dimension_numbers = #tpu.dot_dimension_numbers<[1], [0], [0], [1], [0, 0, 1, 1], [], []>} : vector<32x32xbf16>, vector<32x1xbf16>, vector<32x1xf32> -> vector<32x1xf32>
    %70 = arith.addf %65, %69 : vector<32x1xf32>
    %c8 = arith.constant 8 : index
    %c0_58 = arith.constant 0 : index
    %c0_59 = arith.constant 0 : index
    %71 = vector.load %arg7[%c8, %c0_58, %c0_59] : memref<9x32x32xbf16, #tpu.memory_space<vmem>>, vector<1x32x32xbf16>
    %72 = vector.shape_cast %71 : vector<1x32x32xbf16> to vector<32x32xbf16>
    %73 = vector.extract_strided_slice %5 {offsets = [0, 10], sizes = [32, 1], strides = [1, 1]} : vector<32x16xbf16> to vector<32x1xbf16>
    %cst_60 = arith.constant dense<0.000000e+00> : vector<32x1xf32>
    %74 = tpu.matmul %72, %73, %cst_60 {dimension_numbers = #tpu.dot_dimension_numbers<[1], [0], [0], [1], [0, 0, 1, 1], [], []>} : vector<32x32xbf16>, vector<32x1xbf16>, vector<32x1xf32> -> vector<32x1xf32>
    %75 = arith.addf %70, %74 : vector<32x1xf32>
    %c0_61 = arith.constant 0 : index
    %c0_62 = arith.constant 0 : index
    %c0_63 = arith.constant 0 : index
    %76 = vector.load %arg12[%c0_61, %c0_62, %c0_63] : memref<1x32x1xf32, #tpu.memory_space<vmem>>, vector<1x32x1xf32>
    %77 = vector.shape_cast %76 : vector<1x32x1xf32> to vector<32x1xf32>
    %78 = vector.shape_cast %75 : vector<32x1xf32> to vector<1x32x1xf32>
    tpu.vector_store %arg12[%c0_61, %c0_62, %c0_63], %78 {strides = array<i32>} : memref<1x32x1xf32, #tpu.memory_space<vmem>>, vector<1x32x1xf32>,
    return
  }
  func.func @transform_0(%arg0: i32) -> (i32, i32, i32) {
    %c0_i32 = arith.constant 0 : i32
    %c0_i32_0 = arith.constant 0 : i32
    %c0_i32_1 = arith.constant 0 : i32
    return %arg0, %c0_i32, %c0_i32_0 : i32, i32, i32
  }
  func.func @transform_1(%arg0: i32) -> (i32, i32, i32) {
    %c0_i32 = arith.constant 0 : i32
    %c0_i32_0 = arith.constant 0 : i32
    %c0_i32_1 = arith.constant 0 : i32
    return %arg0, %c0_i32, %c0_i32_0 : i32, i32, i32
  }
  func.func @transform_2(%arg0: i32) -> (i32, i32, i32) {
    %c0_i32 = arith.constant 0 : i32
    %c0_i32_0 = arith.constant 0 : i32
    %c0_i32_1 = arith.constant 0 : i32
    return %arg0, %c0_i32, %c0_i32_0 : i32, i32, i32
  }
  func.func @transform_3(%arg0: i32) -> (i32, i32) {
    %c0_i32 = arith.constant 0 : i32
    %c0_i32_0 = arith.constant 0 : i32
    %c0_i32_1 = arith.constant 0 : i32
    return %c0_i32, %c0_i32_0 : i32, i32
  }
  func.func @transform_4(%arg0: i32) -> (i32, i32) {
    %c0_i32 = arith.constant 0 : i32
    %c0_i32_0 = arith.constant 0 : i32
    %c0_i32_1 = arith.constant 0 : i32
    return %c0_i32, %c0_i32_0 : i32, i32
  }
  func.func @transform_5(%arg0: i32) -> (i32, i32) {
    %c0_i32 = arith.constant 0 : i32
    %c0_i32_0 = arith.constant 0 : i32
    %c0_i32_1 = arith.constant 0 : i32
    return %c0_i32, %c0_i32_0 : i32, i32
  }
  func.func @transform_6(%arg0: i32) -> (i32, i32, i32) {
    %c0_i32 = arith.constant 0 : i32
    %c0_i32_0 = arith.constant 0 : i32
    %c0_i32_1 = arith.constant 0 : i32
    %c0_i32_2 = arith.constant 0 : i32
    return %c0_i32, %c0_i32_0, %c0_i32_1 : i32, i32, i32
  }
  func.func @transform_7(%arg0: i32) -> (i32, i32) {
    %c0_i32 = arith.constant 0 : i32
    %c0_i32_0 = arith.constant 0 : i32
    %c0_i32_1 = arith.constant 0 : i32
    return %c0_i32, %c0_i32_0 : i32, i32
  }
  func.func @transform_8(%arg0: i32) -> (i32, i32, i32) {
    %c0_i32 = arith.constant 0 : i32
    %c0_i32_0 = arith.constant 0 : i32
    %c0_i32_1 = arith.constant 0 : i32
    return %arg0, %c0_i32, %c0_i32_0 : i32, i32, i32
  }
  func.func @transform_9(%arg0: i32) -> (i32, i32, i32) {
    %c0_i32 = arith.constant 0 : i32
    %c0_i32_0 = arith.constant 0 : i32
    %c0_i32_1 = arith.constant 0 : i32
    return %arg0, %c0_i32, %c0_i32_0 : i32, i32, i32
  }
  func.func @transform_10(%arg0: i32) -> (i32, i32, i32) {
    %c0_i32 = arith.constant 0 : i32
    %c0_i32_0 = arith.constant 0 : i32
    %c0_i32_1 = arith.constant 0 : i32
    return %arg0, %c0_i32, %c0_i32_0 : i32, i32, i32
  }
  func.func @transform_11(%arg0: i32) -> (i32, i32, i32) {
    %c0_i32 = arith.constant 0 : i32
    %c0_i32_0 = arith.constant 0 : i32
    %c0_i32_1 = arith.constant 0 : i32
    return %arg0, %c0_i32, %c0_i32_0 : i32, i32, i32
  }
}

</mosaic_0001>

<llo_original>
// kernel: backbone_base_forward.1
$region0: #{backbone_base_forward.1}
  #allocation0 [shape = 'u32[]', space=smem, size = 0x4, offset = 0x4, fixed_abs, tag = 'smem constant byte address 0x4 - core index']
  #allocation1 [shape = 'u32[144,128]{1,0:T(1,128)}', space=vmem, size = 0x12000, scoped, tag = 'internal scratch']
  %s0 = inlined_call_operand.vmem [shape: bf16[2,8,256], index: 0, kind: input, shape index: {}]
  %s1 = inlined_call_operand.vmem [shape: bf16[2,16,64], index: 1, kind: input, shape index: {}]
  %s2 = inlined_call_operand.vmem [shape: bf16[2,32,16], index: 2, kind: input, shape index: {}]
  %s3 = inlined_call_operand.vmem [shape: bf16[32,8], index: 3, kind: input, shape index: {}]
  %s4 = inlined_call_operand.vmem [shape: bf16[32,16], index: 4, kind: input, shape index: {}]
  %s5 = inlined_call_operand.vmem [shape: bf16[32,32], index: 5, kind: input, shape index: {}]
  %s6 = inlined_call_operand.vmem [shape: bf16[9,32,32], index: 6, kind: input, shape index: {}]
  %s7 = inlined_call_operand.vmem [shape: f32[32,4], index: 7, kind: input, shape index: {}]
  %s8 = inlined_call_operand.vmem [shape: f32[2,32,256], index: 8, kind: output, shape index: {0}]
  %s9 = inlined_call_operand.vmem [shape: f32[2,32,64], index: 9, kind: output, shape index: {1}]
  %s10 = inlined_call_operand.vmem [shape: f32[2,32,16], index: 10, kind: output, shape index: {2}]
  %s11 = inlined_call_operand.vmem [shape: f32[2,32,1], index: 11, kind: output, shape index: {3}]
  %12 = xla_tuple %s8, %s9, %s10, %s11
  %s13 = sld [smem:[#allocation0]]
  $region89: #{backbone_base_forward.1} parent=0
    _
  %s15 = ssub.s32 1, %s13
  %s16 = scalar_select 0, %s15, %s13
  loop: start=0, step=1, limit=4
  $region2: #{backbone_base_forward.1} parent=0 // loop_pre_header
    _
  $region3: #{backbone_base_forward.1} parent=0 // loop_header
    %s18 = sphi 0, %s22
    %p19 = scmp.ge.s32.totalorder %s18, 4
    %s28 = sphi 0, %s30
    %s31 = sphi 0, %s28
    %s32 = sphi 0, %s31
    %s48 = sphi 0, %s32
    %s54 = sphi 0, %s56
    %s57 = sphi 0, %s54
    %s58 = sphi 0, %s57
    %s74 = sphi 0, %s58
    %s80 = sphi 0, %s82
    %s83 = sphi 0, %s80
    %s84 = sphi 0, %s83
    %s100 = sphi 0, %s84
    %s104 = sphi 0, %s104
    %s106 = sphi 0, %s104
    %s107 = sphi 0, %s106
    %s121 = sphi 0, %s107
    %s125 = sphi 0, %s125
    %s127 = sphi 0, %s125
    %s128 = sphi 0, %s127
    %s142 = sphi 0, %s128
    %s146 = sphi 0, %s146
    %s148 = sphi 0, %s146
    %s149 = sphi 0, %s148
    %s163 = sphi 0, %s149
    %s167 = sphi 0, %s167
    %s169 = sphi 0, %s167
    %s170 = sphi 0, %s169
    %s184 = sphi 0, %s170
    %s188 = sphi 0, %s188
    %s190 = sphi 0, %s188
    %s191 = sphi 0, %s190
    %s205 = sphi 0, %s191
    %s211 = sphi 0, %s213
    %s214 = sphi 0, %s211
    %s215 = sphi 0, %s214
    %s231 = sphi 0, %s215
    %s237 = sphi 0, %s239
    %s240 = sphi 0, %s237
    %s241 = sphi 0, %s240
    %s257 = sphi 0, %s241
    %s263 = sphi 0, %s265
    %s266 = sphi 0, %s263
    %s267 = sphi 0, %s266
    %s283 = sphi 0, %s267
    %s289 = sphi 0, %s291
    %s292 = sphi 0, %s289
    %s293 = sphi 0, %s292
    %s309 = sphi 0, %s293
  $region4: #{backbone_base_forward.1} parent=0 // loop_header_branch
    %21 = sbr.rel (%p19) target = $region8
  $region5: #{backbone_base_forward.1} parent=0 // loop_body
    %s23 = ssub.s32 %s18, 1
    %s24 = ssub.s32 %s18, 2
    %s25 = sadd.s32 %s18, 1
    %s26 = ssub.s32 %s18, %s25
    %p27 = scmp.eq.s32.totalorder %s26, 0
    %s29 = sadd.s32 %s28, 1
    %s30 = scalar_select %p27, %s28, %s29
    %p33 = pneg %p27
    %p34 = scmp.eq.s32.totalorder %s18, 1
    %p35 = por %p33, %p34
    %p36 = scmp.ne.s32.totalorder %s28, %s31
    %p37 = scmp.eq.s32.totalorder %s18, 0
    %p38 = por %p36, %p37
    %p39 = scmp.ne.s32.totalorder %s28, %s31
    %p40 = scmp.eq.s32.totalorder %s23, 1
    %p41 = por %p39, %p40
    %p42 = scmp.ne.s32.totalorder %s31, %s32
    %p43 = scmp.eq.s32.totalorder %s23, 0
    %p44 = por %p42, %p43
    %p45 = scmp.ne.s32.totalorder %s31, %s32
    %p46 = scmp.eq.s32.totalorder %s24, 1
    %p47 = por %p45, %p46
    %p49 = scmp.ne.s32.totalorder %s32, %s48
    %p50 = scmp.eq.s32.totalorder %s24, 0
    %p51 = por %p49, %p50
    %s52 = ssub.s32 %s18, %s25
    %p53 = scmp.eq.s32.totalorder %s52, 0
    %s55 = sadd.s32 %s54, 1
    %s56 = scalar_select %p53, %s54, %s55
    %p59 = pneg %p53
    %p60 = scmp.eq.s32.totalorder %s18, 1
    %p61 = por %p59, %p60
    %p62 = scmp.ne.s32.totalorder %s54, %s57
    %p63 = scmp.eq.s32.totalorder %s18, 0
    %p64 = por %p62, %p63
    %p65 = scmp.ne.s32.totalorder %s54, %s57
    %p66 = scmp.eq.s32.totalorder %s23, 1
    %p67 = por %p65, %p66
    %p68 = scmp.ne.s32.totalorder %s57, %s58
    %p69 = scmp.eq.s32.totalorder %s23, 0
    %p70 = por %p68, %p69
    %p71 = scmp.ne.s32.totalorder %s57, %s58
    %p72 = scmp.eq.s32.totalorder %s24, 1
    %p73 = por %p71, %p72
    %p75 = scmp.ne.s32.totalorder %s58, %s74
    %p76 = scmp.eq.s32.totalorder %s24, 0
    %p77 = por %p75, %p76
    %s78 = ssub.s32 %s18, %s25
    %p79 = scmp.eq.s32.totalorder %s78, 0
    %s81 = sadd.s32 %s80, 1
    %s82 = scalar_select %p79, %s80, %s81
    %p85 = pneg %p79
    %p86 = scmp.eq.s32.totalorder %s18, 1
    %p87 = por %p85, %p86
    %p88 = scmp.ne.s32.totalorder %s80, %s83
    %p89 = scmp.eq.s32.totalorder %s18, 0
    %p90 = por %p88, %p89
    %p91 = scmp.ne.s32.totalorder %s80, %s83
    %p92 = scmp.eq.s32.totalorder %s23, 1
    %p93 = por %p91, %p92
    %p94 = scmp.ne.s32.totalorder %s83, %s84
    %p95 = scmp.eq.s32.totalorder %s23, 0
    %p96 = por %p94, %p95
    %p97 = scmp.ne.s32.totalorder %s83, %s84
    %p98 = scmp.eq.s32.totalorder %s24, 1
    %p99 = por %p97, %p98
    %p101 = scmp.ne.s32.totalorder %s84, %s100
    %p102 = scmp.eq.s32.totalorder %s24, 0
    %p103 = por %p101, %p102
    %s105 = sadd.s32 %s104, 1
    %p108 = scmp.eq.s32.totalorder %s18, 1
    %p109 = scmp.ne.s32.totalorder %s104, %s106
    %p110 = scmp.eq.s32.totalorder %s18, 0
    %p111 = por %p109, %p110
    %p112 = scmp.ne.s32.totalorder %s104, %s106
    %p113 = scmp.eq.s32.totalorder %s23, 1
    %p114 = por %p112, %p113
    %p115 = scmp.ne.s32.totalorder %s106, %s107
    %p116 = scmp.eq.s32.totalorder %s23, 0
    %p117 = por %p115, %p116
    %p118 = scmp.ne.s32.totalorder %s106, %s107
    %p119 = scmp.eq.s32.totalorder %s24, 1
    %p120 = por %p118, %p119
    %p122 = scmp.ne.s32.totalorder %s107, %s121
    %p123 = scmp.eq.s32.totalorder %s24, 0
    %p124 = por %p122, %p123
    %s126 = sadd.s32 %s125, 1
    %p129 = scmp.eq.s32.totalorder %s18, 1
    %p130 = scmp.ne.s32.totalorder %s125, %s127
    %p131 = scmp.eq.s32.totalorder %s18, 0
    %p132 = por %p130, %p131
    %p133 = scmp.ne.s32.totalorder %s125, %s127
    %p134 = scmp.eq.s32.totalorder %s23, 1
    %p135 = por %p133, %p134
    %p136 = scmp.ne.s32.totalorder %s127, %s128
    %p137 = scmp.eq.s32.totalorder %s23, 0
    %p138 = por %p136, %p137
    %p139 = scmp.ne.s32.totalorder %s127, %s128
    %p140 = scmp.eq.s32.totalorder %s24, 1
    %p141 = por %p139, %p140
    %p143 = scmp.ne.s32.totalorder %s128, %s142
    %p144 = scmp.eq.s32.totalorder %s24, 0
    %p145 = por %p143, %p144
    %s147 = sadd.s32 %s146, 1
    %p150 = scmp.eq.s32.totalorder %s18, 1
    %p151 = scmp.ne.s32.totalorder %s146, %s148
    %p152 = scmp.eq.s32.totalorder %s18, 0
    %p153 = por %p151, %p152
    %p154 = scmp.ne.s32.totalorder %s146, %s148
    %p155 = scmp.eq.s32.totalorder %s23, 1
    %p156 = por %p154, %p155
    %p157 = scmp.ne.s32.totalorder %s148, %s149
    %p158 = scmp.eq.s32.totalorder %s23, 0
    %p159 = por %p157, %p158
    %p160 = scmp.ne.s32.totalorder %s148, %s149
    %p161 = scmp.eq.s32.totalorder %s24, 1
    %p162 = por %p160, %p161
    %p164 = scmp.ne.s32.totalorder %s149, %s163
    %p165 = scmp.eq.s32.totalorder %s24, 0
    %p166 = por %p164, %p165
    %s168 = sadd.s32 %s167, 1
    %p171 = scmp.eq.s32.totalorder %s18, 1
    %p172 = scmp.ne.s32.totalorder %s167, %s169
    %p173 = scmp.eq.s32.totalorder %s18, 0
    %p174 = por %p172, %p173
    %p175 = scmp.ne.s32.totalorder %s167, %s169
    %p176 = scmp.eq.s32.totalorder %s23, 1
    %p177 = por %p175, %p176
    %p178 = scmp.ne.s32.totalorder %s169, %s170
    %p179 = scmp.eq.s32.totalorder %s23, 0
    %p180 = por %p178, %p179
    %p181 = scmp.ne.s32.totalorder %s169, %s170
    %p182 = scmp.eq.s32.totalorder %s24, 1
    %p183 = por %p181, %p182
    %p185 = scmp.ne.s32.totalorder %s170, %s184
    %p186 = scmp.eq.s32.totalorder %s24, 0
    %p187 = por %p185, %p186
    %s189 = sadd.s32 %s188, 1
    %p192 = scmp.eq.s32.totalorder %s18, 1
    %p193 = scmp.ne.s32.totalorder %s188, %s190
    %p194 = scmp.eq.s32.totalorder %s18, 0
    %p195 = por %p193, %p194
    %p196 = scmp.ne.s32.totalorder %s188, %s190
    %p197 = scmp.eq.s32.totalorder %s23, 1
    %p198 = por %p196, %p197
    %p199 = scmp.ne.s32.totalorder %s190, %s191
    %p200 = scmp.eq.s32.totalorder %s23, 0
    %p201 = por %p199, %p200
    %p202 = scmp.ne.s32.totalorder %s190, %s191
    %p203 = scmp.eq.s32.totalorder %s24, 1
    %p204 = por %p202, %p203
    %p206 = scmp.ne.s32.totalorder %s191, %s205
    %p207 = scmp.eq.s32.totalorder %s24, 0
    %p208 = por %p206, %p207
    %s209 = ssub.s32 %s18, %s25
    %p210 = scmp.eq.s32.totalorder %s209, 0
    %s212 = sadd.s32 %s211, 1
    %s213 = scalar_select %p210, %s211, %s212
    %p216 = pneg %p210
    %p217 = scmp.eq.s32.totalorder %s18, 1
    %p218 = por %p216, %p217
    %p219 = scmp.ne.s32.totalorder %s211, %s214
    %p220 = scmp.eq.s32.totalorder %s18, 0
    %p221 = por %p219, %p220
    %p222 = scmp.ne.s32.totalorder %s211, %s214
    %p223 = scmp.eq.s32.totalorder %s23, 1
    %p224 = por %p222, %p223
    %p225 = scmp.ne.s32.totalorder %s214, %s215
    %p226 = scmp.eq.s32.totalorder %s23, 0
    %p227 = por %p225, %p226
    %p228 = scmp.ne.s32.totalorder %s214, %s215
    %p229 = scmp.eq.s32.totalorder %s24, 1
    %p230 = por %p228, %p229
    %p232 = scmp.ne.s32.totalorder %s215, %s231
    %p233 = scmp.eq.s32.totalorder %s24, 0
    %p234 = por %p232, %p233
    %s235 = ssub.s32 %s18, %s25
    %p236 = scmp.eq.s32.totalorder %s235, 0
    %s238 = sadd.s32 %s237, 1
    %s239 = scalar_select %p236, %s237, %s238
    %p242 = pneg %p236
    %p243 = scmp.eq.s32.totalorder %s18, 1
    %p244 = por %p242, %p243
    %p245 = scmp.ne.s32.totalorder %s237, %s240
    %p246 = scmp.eq.s32.totalorder %s18, 0
    %p247 = por %p245, %p246
    %p248 = scmp.ne.s32.totalorder %s237, %s240
    %p249 = scmp.eq.s32.totalorder %s23, 1
    %p250 = por %p248, %p249
    %p251 = scmp.ne.s32.totalorder %s240, %s241
    %p252 = scmp.eq.s32.totalorder %s23, 0
    %p253 = por %p251, %p252
    %p254 = scmp.ne.s32.totalorder %s240, %s241
    %p255 = scmp.eq.s32.totalorder %s24, 1
    %p256 = por %p254, %p255
    %p258 = scmp.ne.s32.totalorder %s241, %s257
    %p259 = scmp.eq.s32.totalorder %s24, 0
    %p260 = por %p258, %p259
    %s261 = ssub.s32 %s18, %s25
    %p262 = scmp.eq.s32.totalorder %s261, 0
    %s264 = sadd.s32 %s263, 1
    %s265 = scalar_select %p262, %s263, %s264
    %p268 = pneg %p262
    %p269 = scmp.eq.s32.totalorder %s18, 1
    %p270 = por %p268, %p269
    %p271 = scmp.ne.s32.totalorder %s263, %s266
    %p272 = scmp.eq.s32.totalorder %s18, 0
    %p273 = por %p271, %p272
    %p274 = scmp.ne.s32.totalorder %s263, %s266
    %p275 = scmp.eq.s32.totalorder %s23, 1
    %p276 = por %p274, %p275
    %p277 = scmp.ne.s32.totalorder %s266, %s267
    %p278 = scmp.eq.s32.totalorder %s23, 0
    %p279 = por %p277, %p278
    %p280 = scmp.ne.s32.totalorder %s266, %s267
    %p281 = scmp.eq.s32.totalorder %s24, 1
    %p282 = por %p280, %p281
    %p284 = scmp.ne.s32.totalorder %s267, %s283
    %p285 = scmp.eq.s32.totalorder %s24, 0
    %p286 = por %p284, %p285
    %s287 = ssub.s32 %s18, %s25
    %p288 = scmp.eq.s32.totalorder %s287, 0
    %s290 = sadd.s32 %s289, 1
    %s291 = scalar_select %p288, %s289, %s290
    %p294 = pneg %p288
    %p295 = scmp.eq.s32.totalorder %s18, 1
    %p296 = por %p294, %p295
    %p297 = scmp.ne.s32.totalorder %s289, %s292
    %p298 = scmp.eq.s32.totalorder %s18, 0
    %p299 = por %p297, %p298
    %p300 = scmp.ne.s32.totalorder %s289, %s292
    %p301 = scmp.eq.s32.totalorder %s23, 1
    %p302 = por %p300, %p301
    %p303 = scmp.ne.s32.totalorder %s292, %s293
    %p304 = scmp.eq.s32.totalorder %s23, 0
    %p305 = por %p303, %p304
    %p306 = scmp.ne.s32.totalorder %s292, %s293
    %p307 = scmp.eq.s32.totalorder %s24, 1
    %p308 = por %p306, %p307
    %p310 = scmp.ne.s32.totalorder %s293, %s309
    %p311 = scmp.eq.s32.totalorder %s24, 0
    %p312 = por %p310, %p311
    %p313 = scmp.le.s32.totalorder 1, %s18
    %p314 = scmp.lt.s32.totalorder %s18, 3
    %p315 = pnand %p313, %p314
    %p316 = pneg %p315
    // Predicated region
    $region9: #{backbone_base_forward.1} parent=5 // pred_check
      _
    $region10: #{backbone_base_forward.1} parent=5 // pred_check_branch
      %318 = sbr.rel (%p315) target = $region12
    $region11: #{backbone_base_forward.1} parent=5 // pred_region
      %s319 = ssub.s32 %s18, 1
      // Predicated region
      $region13: #{backbone_base_forward.1} parent=11 // pred_check
        %p320 = pneg %p117
      $region14: #{backbone_base_forward.1} parent=11 // pred_check_branch
        %322 = sbr.rel (%p320) target = $region16
      $region15: #{backbone_base_forward.1} parent=11 // pred_region
        _
      $region16: #{backbone_base_forward.1} parent=11 // pred_fallthru
        _
      // Predicated region
      $region17: #{backbone_base_forward.1} parent=11 // pred_check
        %p323 = pneg %p138
      $region18: #{backbone_base_forward.1} parent=11 // pred_check_branch
        %325 = sbr.rel (%p323) target = $region20
      $region19: #{backbone_base_forward.1} parent=11 // pred_region
        _
      $region20: #{backbone_base_forward.1} parent=11 // pred_fallthru
        _
      // Predicated region
      $region21: #{backbone_base_forward.1} parent=11 // pred_check
        %p326 = pneg %p159
      $region22: #{backbone_base_forward.1} parent=11 // pred_check_branch
        %328 = sbr.rel (%p326) target = $region24
      $region23: #{backbone_base_forward.1} parent=11 // pred_region
        _
      $region24: #{backbone_base_forward.1} parent=11 // pred_fallthru
        _
      // Predicated region
      $region25: #{backbone_base_forward.1} parent=11 // pred_check
        %p329 = pneg %p180
      $region26: #{backbone_base_forward.1} parent=11 // pred_check_branch
        %331 = sbr.rel (%p329) target = $region28
      $region27: #{backbone_base_forward.1} parent=11 // pred_region
        _
      $region28: #{backbone_base_forward.1} parent=11 // pred_fallthru
        _
      // Predicated region
      $region29: #{backbone_base_forward.1} parent=11 // pred_check
        %p332 = pneg %p201
      $region30: #{backbone_base_forward.1} parent=11 // pred_check_branch
        %334 = sbr.rel (%p332) target = $region32
      $region31: #{backbone_base_forward.1} parent=11 // pred_region
        _
      $region32: #{backbone_base_forward.1} parent=11 // pred_fallthru
        _
    $region12: #{backbone_base_forward.1} parent=5 // pred_fallthru
      _
    %p335 = scmp.lt.s32.totalorder %s18, 2
    // Predicated region
    $region33: #{backbone_base_forward.1} parent=5 // pred_check
      %p336 = pneg %p335
    $region34: #{backbone_base_forward.1} parent=5 // pred_check_branch
      %338 = sbr.rel (%p336) target = $region36
    $region35: #{backbone_base_forward.1} parent=5 // pred_region
      // Predicated region
      $region37: #{backbone_base_forward.1} parent=35 // pred_check
        %p339 = pneg %p38
      $region38: #{backbone_base_forward.1} parent=35 // pred_check_branch
        %341 = sbr.rel (%p339) target = $region40
      $region39: #{backbone_base_forward.1} parent=35 // pred_region
        %p342 = scmp.lt.s32.totalorder %s18, 1
        %s343 = scalar_select %p342, %s18, 1
        %s344 = smul.addr %s343, 2
        %s345 = smul.addr %s344, 4
        %s346 = scalar_lea.vmem %s0, %s345
      $region40: #{backbone_base_forward.1} parent=35 // pred_fallthru
        _
      // Predicated region
      $region41: #{backbone_base_forward.1} parent=35 // pred_check
        %p347 = pneg %p64
      $region42: #{backbone_base_forward.1} parent=35 // pred_check_branch
        %349 = sbr.rel (%p347) target = $region44
      $region43: #{backbone_base_forward.1} parent=35 // pred_region
        %p350 = scmp.lt.s32.totalorder %s18, 1
        %s351 = scalar_select %p350, %s18, 1
        %s352 = smul.addr %s351, 2
        %s353 = smul.addr %s352, 4
        %s354 = scalar_lea.vmem %s1, %s353
      $region44: #{backbone_base_forward.1} parent=35 // pred_fallthru
        _
      // Predicated region
      $region45: #{backbone_base_forward.1} parent=35 // pred_check
        %p355 = pneg %p90
      $region46: #{backbone_base_forward.1} parent=35 // pred_check_branch
        %357 = sbr.rel (%p355) target = $region48
      $region47: #{backbone_base_forward.1} parent=35 // pred_region
        %p358 = scmp.lt.s32.totalorder %s18, 1
        %s359 = scalar_select %p358, %s18, 1
        %s360 = smul.addr %s359, 4
        %s361 = smul.addr %s360, 4
        %s362 = scalar_lea.vmem %s2, %s361
      $region48: #{backbone_base_forward.1} parent=35 // pred_fallthru
        _
    $region36: #{backbone_base_forward.1} parent=5 // pred_fallthru
      _
    %p363 = scmp.le.s32.totalorder 1, %s18
    %p364 = scmp.lt.s32.totalorder %s18, 3
    %p365 = pnand %p363, %p364
    %p366 = pneg %p365
    // Predicated region
    $region49: #{backbone_base_forward.1} parent=5 // pred_check
      _
    $region50: #{backbone_base_forward.1} parent=5 // pred_check_branch
      %368 = sbr.rel (%p365) target = $region52
    $region51: #{backbone_base_forward.1} parent=5 // pred_region
      %s369 = ssub.s32 %s18, 1
      %p370 = scmp.lt.s32.totalorder %s23, 1
      %s371 = scalar_select %p370, %s23, 1
      %s372 = smul.addr %s371, 2
      %s373 = smul.addr %s372, 4
      %s374 = scalar_lea.vmem %s0, %s373
      %p375 = pneg %p44
      %p376 = pneg %p41
      %p377 = scmp.lt.s32.totalorder %s23, 1
      %s378 = scalar_select %p377, %s23, 1
      %s379 = smul.addr %s378, 2
      %s380 = smul.addr %s379, 4
      %s381 = scalar_lea.vmem %s1, %s380
      %p382 = pneg %p70
      %p383 = pneg %p67
      %p384 = scmp.lt.s32.totalorder %s23, 1
      %s385 = scalar_select %p384, %s23, 1
      %s386 = smul.addr %s385, 4
      %s387 = smul.addr %s386, 4
      %s388 = scalar_lea.vmem %s2, %s387
      %p389 = pneg %p96
      %p390 = pneg %p93
      %p391 = pneg %p117
      %p392 = pneg %p114
      %p393 = pneg %p138
      %p394 = pneg %p135
      %p395 = pneg %p159
      %p396 = pneg %p156
      %p397 = pneg %p180
      %p398 = pneg %p177
      %p399 = pneg %p201
      %p400 = pneg %p198
      %p401 = pneg %p227
      %p402 = pneg %p224
      %p403 = scmp.lt.s32.totalorder %s23, 1
      %s404 = scalar_select %p403, %s23, 1
      %s405 = smul.addr %s404, 8
      %s406 = smul.addr %s405, 8
      %s407 = scalar_lea.vmem %s8, %s406
      %p408 = pneg %p253
      %p409 = pneg %p250
      %p410 = scmp.lt.s32.totalorder %s23, 1
      %s411 = scalar_select %p410, %s23, 1
      %s412 = smul.addr %s411, 4
      %s413 = smul.addr %s412, 8
      %s414 = scalar_lea.vmem %s9, %s413
      %p415 = pneg %p279
      %p416 = pneg %p276
      %p417 = scmp.lt.s32.totalorder %s23, 1
      %s418 = scalar_select %p417, %s23, 1
      %s419 = smul.addr %s418, 4
      %s420 = smul.addr %s419, 8
      %s421 = scalar_lea.vmem %s10, %s420
      %p422 = pneg %p305
      %p423 = pneg %p302
      %p424 = scmp.lt.s32.totalorder %s23, 1
      %s425 = scalar_select %p424, %s23, 1
      %s426 = smul.addr %s425, 4
      %s427 = smul.addr %s426, 8
      %s428 = scalar_lea.vmem %s11, %s427
      %p429 = scmp.lt.s32.totalorder %s23, 1
      %s430 = scalar_select %p429, %s23, 1
      %s431 = smul.addr %s430, 2
      %s432 = smul.addr %s431, 4
      %s433 = scalar_lea.vmem %s0, %s432
      %p434 = scmp.lt.s32.totalorder %s23, 1
      %s435 = scalar_select %p434, %s23, 1
      %s436 = smul.addr %s435, 2
      %s437 = smul.addr %s436, 4
      %s438 = scalar_lea.vmem %s1, %s437
      %p439 = scmp.lt.s32.totalorder %s23, 1
      %s440 = scalar_select %p439, %s23, 1
      %s441 = smul.addr %s440, 4
      %s442 = smul.addr %s441, 4
      %s443 = scalar_lea.vmem %s2, %s442
      %p444 = scmp.lt.s32.totalorder %s23, 1
      %s445 = scalar_select %p444, %s23, 1
      %s446 = smul.addr %s445, 8
      %s447 = smul.addr %s446, 8
      %s448 = scalar_lea.vmem %s8, %s447
      %p449 = scmp.lt.s32.totalorder %s23, 1
      %s450 = scalar_select %p449, %s23, 1
      %s451 = smul.addr %s450, 4
      %s452 = smul.addr %s451, 8
      %s453 = scalar_lea.vmem %s9, %s452
      %p454 = scmp.lt.s32.totalorder %s23, 1
      %s455 = scalar_select %p454, %s23, 1
      %s456 = smul.addr %s455, 4
      %s457 = smul.addr %s456, 8
      %s458 = scalar_lea.vmem %s10, %s457
      %p459 = scmp.lt.s32.totalorder %s23, 1
      %s460 = scalar_select %p459, %s23, 1
      %s461 = smul.addr %s460, 4
      %s462 = smul.addr %s461, 8
      %s463 = scalar_lea.vmem %s11, %s462
      %v465 = vld [vmem:[%s433] sm:$0xff]
      %v466 = vld [vmem:[%s438] sm:$0xf]
      %v467 = vld [vmem:[%s438 + $0x4] sm:$0xf]
      %v468 = vld [vmem:[%s443] sm:$0xf]
      %v469 = vld [vmem:[%s443 + $0x4] sm:$0xf]
      %v470 = vld [vmem:[%s443 + $0x8] sm:$0xf]
      %v471 = vld [vmem:[%s443 + $0xc] sm:$0xf]
      %v472 = vld [vmem:[%s7] sm:$0xff]
      %v473 = vld [vmem:[%s7 + $0x8] sm:$0xff]
      %v474 = vld [vmem:[%s7 + $0x10] sm:$0xff]
      %v475 = vld [vmem:[%s7 + $0x18] sm:$0xff]
      %v476 = vld [vmem:[%s3] sm:$0xf]
      %v477 = vld [vmem:[%s3 + $0x4] sm:$0xf]
      %v478 = vld [vmem:[%s3 + $0x8] sm:$0xf]
      %v479 = vld [vmem:[%s3 + $0xc] sm:$0xf]
      %481 = vset.pattern.permute.xlu0 0
      %482 = vperm.xlu0 %481, %v472
      %v483 = vpop.permute.xlu0 %482
      %486 = vset.pattern.permute.xlu0 0
      %487 = vperm.xlu0 %486, %v473
      %v488 = vpop.permute.xlu0 %487
      %491 = vset.pattern.permute.xlu0 0
      %492 = vperm.xlu0 %491, %v474
      %v493 = vpop.permute.xlu0 %492
      %496 = vset.pattern.permute.xlu0 0
      %497 = vperm.xlu0 %496, %v475
      %v498 = vpop.permute.xlu0 %497
      %v504 = vunpack.c.l.b16 %v476
      %v505 = vunpack.c.l.b16 %v477
      %v506 = vunpack.c.l.b16 %v478
      %v507 = vunpack.c.l.b16 %v479
      %v508 = vpack.c.b16 %v505, %v504
      %v509 = vpack.c.b16 %v507, %v506
      %v511 = vunpack.c.l.b16 %v465
      %v512 = vunpack.c.h.b16 %v465
      %v513 = vpack.c.b16 %v511, %v511
      %v514 = vpack.c.b16 %v512, %v512
      %vm515 = vcmask 64512
      %v517 = vsel %vm515, %v508, 0
      %v520 = vsel %vm515, %v509, 0
      %vm522 = vcmask 1043456
      %v524 = vsel %vm522, %v513, 0
      %v527 = vsel %vm522, %v514, 0
      %529 = vmatprep.subr.bf16.mxu0 0
      %530 = vmatpush1.bf16.msra.mxu0 0
      %531 = vmatprep.subr.bf16.mxu0 0
      %532 = vmatpush1.bf16.msra.mxu0 0
      %533 = vmatprep.subr.bf16.mxu0 0
      %534 = vmatpush1.bf16.msra.mxu0 0
      %535 = vmatprep.subr.bf16.mxu0 0
      %536 = vmatpush1.bf16.msra.mxu0 0
      %537 = vmatprep.subr.bf16.mxu0 0
      %538 = vmatpush1.bf16.msra.mxu0 0
      %539 = vmatprep.subr.bf16.mxu0 0
      %540 = vmatpush1.bf16.msra.mxu0 0
      %541 = vmatprep.subr.bf16.mxu0 0
      %542 = vmatpush1.bf16.msra.mxu0 0
      %543 = vmatprep.subr.bf16.mxu0 %v527
      %544 = vmatpush1.bf16.msra.mxu0 %v524
      %545 = vmatprep.subr.bf16.mxu0 0
      %546 = vmatpush2.bf16.msra.mxu0 0
      %547 = vmatprep.subr.bf16.mxu0 0
      %548 = vmatpush2.bf16.msra.mxu0 0
      %549 = vmatprep.subr.bf16.mxu0 0
      %550 = vmatpush2.bf16.msra.mxu0 0
      %551 = vmatprep.subr.bf16.mxu0 0
      %552 = vmatpush2.bf16.msra.mxu0 0
      %553 = vmatprep.subr.bf16.mxu0 0
      %554 = vmatpush2.bf16.msra.mxu0 0
      %555 = vmatprep.subr.bf16.mxu0 0
      %556 = vmatpush2.bf16.msra.mxu0 0
      %557 = vmatprep.subr.bf16.mxu0 0
      %558 = vmatpush2.bf16.msra.mxu0 0
      %559 = vmatprep.subr.bf16.mxu0 0
      %560 = vmatpush2.bf16.msra.mxu0 0
      %561 = vmatprep.mubr.bf16.mxu0 0
      %562 = vmatmul.mubr.bf16.gmra.mxu0 %v517
      %v563 = vpop.f32.mrf.mxu0
      %v564 = vadd.f32 %v483, %v563
      %v565 = vpop.f32.mrf.mxu0
      %v566 = vadd.f32 %v483, %v565
      %v567 = vpop.f32.mrf.mxu0
      %v568 = vadd.f32 %v488, %v567
      %v569 = vpop.f32.mrf.mxu0
      %v570 = vadd.f32 %v488, %v569
      %571 = vmatprep.mubr.bf16.mxu0 0
      %572 = vmatmul.mubr.bf16.gmra.mxu0 %v520
      %v573 = vpop.f32.mrf.mxu0
      %v574 = vadd.f32 %v493, %v573
      %v575 = vpop.f32.mrf.mxu0
      %v576 = vadd.f32 %v493, %v575
      %v577 = vpop.f32.mrf.mxu0
      %v578 = vadd.f32 %v498, %v577
      %v579 = vpop.f32.mrf.mxu0
      %v580 = vadd.f32 %v498, %v579
      %581 = vdwg.mxu0
      %582 = vst [vmem:[%s448] sm:$0xff] %v564
      %583 = vst [vmem:[%s448 + $0x8] sm:$0xff] %v566
      %584 = vst [vmem:[%s448 + $0x10] sm:$0xff] %v568
      %585 = vst [vmem:[%s448 + $0x18] sm:$0xff] %v570
      %586 = vst [vmem:[%s448 + $0x20] sm:$0xff] %v574
      %587 = vst [vmem:[%s448 + $0x28] sm:$0xff] %v576
      %588 = vst [vmem:[%s448 + $0x30] sm:$0xff] %v578
      %589 = vst [vmem:[%s448 + $0x38] sm:$0xff] %v580
      %v590 = vld [vmem:[%s4] sm:$0xf]
      %v591 = vld [vmem:[%s4 + $0x4] sm:$0xf]
      %v592 = vld [vmem:[%s4 + $0x8] sm:$0xf]
      %v593 = vld [vmem:[%s4 + $0xc] sm:$0xf]
      %594 = vset.pattern.permute.xlu0 1
      %595 = vperm.xlu0 %594, %v472
      %v596 = vpop.permute.xlu0 %595
      %598 = vset.pattern.permute.xlu0 1
      %599 = vperm.xlu0 %598, %v473
      %v600 = vpop.permute.xlu0 %599
      %602 = vset.pattern.permute.xlu0 1
      %603 = vperm.xlu0 %602, %v474
      %v604 = vpop.permute.xlu0 %603
      %606 = vset.pattern.permute.xlu0 1
      %607 = vperm.xlu0 %606, %v475
      %v608 = vpop.permute.xlu0 %607
      %v614 = vunpack.c.l.b16 %v590
      %v615 = vunpack.c.l.b16 %v591
      %v616 = vunpack.c.l.b16 %v592
      %v617 = vunpack.c.l.b16 %v593
      %v618 = vpack.c.b16 %v615, %v614
      %v619 = vpack.c.b16 %v617, %v616
      %v622 = vunpack.c.l.b16 %v466
      %v623 = vunpack.c.l.b16 %v467
      %v624 = vpack.c.b16 %v623, %v622
      %vm626 = vcmask 130048
      %v628 = vsel %vm626, %v618, 0
      %v631 = vsel %vm626, %v619, 0
      %633 = vmatprep.subr.bf16.mxu0 0
      %634 = vmatpush1.bf16.msra.mxu0 0
      %635 = vmatprep.subr.bf16.mxu0 0
      %636 = vmatpush1.bf16.msra.mxu0 0
      %637 = vmatprep.subr.bf16.mxu0 0
      %638 = vmatpush1.bf16.msra.mxu0 0
      %639 = vmatprep.subr.bf16.mxu0 0
      %640 = vmatpush1.bf16.msra.mxu0 0
      %641 = vmatprep.subr.bf16.mxu0 0
      %642 = vmatpush1.bf16.msra.mxu0 0
      %643 = vmatprep.subr.bf16.mxu0 0
      %644 = vmatpush1.bf16.msra.mxu0 0
      %645 = vmatprep.subr.bf16.mxu0 0
      %646 = vmatpush1.bf16.msra.mxu0 0
      %647 = vmatprep.subr.bf16.mxu0 0
      %648 = vmatpush1.bf16.msra.mxu0 %v624
      %649 = vmatprep.subr.bf16.mxu0 0
      %650 = vmatpush2.bf16.msra.mxu0 0
      %651 = vmatprep.subr.bf16.mxu0 0
      %652 = vmatpush2.bf16.msra.mxu0 0
      %653 = vmatprep.subr.bf16.mxu0 0
      %654 = vmatpush2.bf16.msra.mxu0 0
      %655 = vmatprep.subr.bf16.mxu0 0
      %656 = vmatpush2.bf16.msra.mxu0 0
      %657 = vmatprep.subr.bf16.mxu0 0
      %658 = vmatpush2.bf16.msra.mxu0 0
      %659 = vmatprep.subr.bf16.mxu0 0
      %660 = vmatpush2.bf16.msra.mxu0 0
      %661 = vmatprep.subr.bf16.mxu0 0
      %662 = vmatpush2.bf16.msra.mxu0 0
      %663 = vmatprep.subr.bf16.mxu0 0
      %664 = vmatpush2.bf16.msra.mxu0 0
      %665 = vmatprep.mubr.bf16.mxu0 0
      %666 = vmatmul.mubr.bf16.gmra.mxu0 %v628
      %v667 = vpop.f32.mrf.mxu0
      %v668 = vadd.f32 %v596, %v667
      %v669 = vpop.f32.mrf.mxu0
      %v670 = vpop.f32.mrf.mxu0
      %v671 = vadd.f32 %v600, %v670
      %v672 = vpop.f32.mrf.mxu0
      %673 = vmatprep.mubr.bf16.mxu0 0
      %674 = vmatmul.mubr.bf16.gmra.mxu0 %v631
      %v675 = vpop.f32.mrf.mxu0
      %v676 = vadd.f32 %v604, %v675
      %v677 = vpop.f32.mrf.mxu0
      %v678 = vpop.f32.mrf.mxu0
      %v679 = vadd.f32 %v608, %v678
      %v680 = vpop.f32.mrf.mxu0
      %681 = vdwg.mxu0
      %vm682 = vcmask 523264
      %683 = vst.msk [vmem:[%s453] sm:$0xff] %vm682, %v668
      %684 = vst.msk [vmem:[%s453 + $0x8] sm:$0xff] %vm682, %v671
      %685 = vst.msk [vmem:[%s453 + $0x10] sm:$0xff] %vm682, %v676
      %686 = vst.msk [vmem:[%s453 + $0x18] sm:$0xff] %vm682, %v679
      %v687 = vld [vmem:[%s5] sm:$0xf]
      %v688 = vld [vmem:[%s5 + $0x4] sm:$0xf]
      %v689 = vld [vmem:[%s5 + $0x8] sm:$0xf]
      %v690 = vld [vmem:[%s5 + $0xc] sm:$0xf]
      %691 = vset.pattern.permute.xlu0 2
      %692 = vperm.xlu0 %691, %v472
      %v693 = vpop.permute.xlu0 %692
      %695 = vset.pattern.permute.xlu0 2
      %696 = vperm.xlu0 %695, %v473
      %v697 = vpop.permute.xlu0 %696
      %699 = vset.pattern.permute.xlu0 2
      %700 = vperm.xlu0 %699, %v474
      %v701 = vpop.permute.xlu0 %700
      %703 = vset.pattern.permute.xlu0 2
      %704 = vperm.xlu0 %703, %v475
      %v705 = vpop.permute.xlu0 %704
      %v711 = vunpack.c.l.b16 %v687
      %v712 = vunpack.c.l.b16 %v688
      %v713 = vunpack.c.l.b16 %v689
      %v714 = vunpack.c.l.b16 %v690
      %v715 = vpack.c.b16 %v712, %v711
      %v716 = vpack.c.b16 %v714, %v713
      %v721 = vunpack.c.l.b16 %v468
      %v722 = vunpack.c.l.b16 %v469
      %v723 = vunpack.c.l.b16 %v470
      %v724 = vunpack.c.l.b16 %v471
      %v725 = vpack.c.b16 %v722, %v721
      %v726 = vpack.c.b16 %v724, %v723
      %vm729 = vcmask 261120
      %v731 = vsel %vm729, %v715, 0
      %v734 = vsel %vm729, %v716, 0
      %736 = vmatprep.subr.bf16.mxu0 0
      %737 = vmatpush1.bf16.msra.mxu0 0
      %738 = vmatprep.subr.bf16.mxu0 0
      %739 = vmatpush1.bf16.msra.mxu0 0
      %740 = vmatprep.subr.bf16.mxu0 0
      %741 = vmatpush1.bf16.msra.mxu0 0
      %742 = vmatprep.subr.bf16.mxu0 0
      %743 = vmatpush1.bf16.msra.mxu0 0
      %744 = vmatprep.subr.bf16.mxu0 0
      %745 = vmatpush1.bf16.msra.mxu0 0
      %746 = vmatprep.subr.bf16.mxu0 0
      %747 = vmatpush1.bf16.msra.mxu0 0
      %748 = vmatprep.subr.bf16.mxu0 0
      %749 = vmatpush1.bf16.msra.mxu0 %v726
      %750 = vmatprep.subr.bf16.mxu0 0
      %751 = vmatpush1.bf16.msra.mxu0 %v725
      %752 = vmatprep.subr.bf16.mxu0 0
      %753 = vmatpush2.bf16.msra.mxu0 0
      %754 = vmatprep.subr.bf16.mxu0 0
      %755 = vmatpush2.bf16.msra.mxu0 0
      %756 = vmatprep.subr.bf16.mxu0 0
      %757 = vmatpush2.bf16.msra.mxu0 0
      %758 = vmatprep.subr.bf16.mxu0 0
      %759 = vmatpush2.bf16.msra.mxu0 0
      %760 = vmatprep.subr.bf16.mxu0 0
      %761 = vmatpush2.bf16.msra.mxu0 0
      %762 = vmatprep.subr.bf16.mxu0 0
      %763 = vmatpush2.bf16.msra.mxu0 0
      %764 = vmatprep.subr.bf16.mxu0 0
      %765 = vmatpush2.bf16.msra.mxu0 0
      %766 = vmatprep.subr.bf16.mxu0 0
      %767 = vmatpush2.bf16.msra.mxu0 0
      %768 = vmatprep.mubr.bf16.mxu0 0
      %769 = vmatmul.mubr.bf16.gmra.mxu0 %v731
      %v770 = vpop.f32.mrf.mxu0
      %v771 = vadd.f32 %v693, %v770
      %v772 = vpop.f32.mrf.mxu0
      %v773 = vpop.f32.mrf.mxu0
      %v774 = vadd.f32 %v697, %v773
      %v775 = vpop.f32.mrf.mxu0
      %776 = vmatprep.mubr.bf16.mxu0 0
      %777 = vmatmul.mubr.bf16.gmra.mxu0 %v734
      %v778 = vpop.f32.mrf.mxu0
      %v779 = vadd.f32 %v701, %v778
      %v780 = vpop.f32.mrf.mxu0
      %v781 = vpop.f32.mrf.mxu0
      %v782 = vadd.f32 %v705, %v781
      %v783 = vpop.f32.mrf.mxu0
      %784 = vdwg.mxu0
      %785 = vst.msk [vmem:[%s458] sm:$0xff] %vm626, %v771
      %786 = vst.msk [vmem:[%s458 + $0x8] sm:$0xff] %vm626, %v774
      %787 = vst.msk [vmem:[%s458 + $0x10] sm:$0xff] %vm626, %v779
      %788 = vst.msk [vmem:[%s458 + $0x18] sm:$0xff] %vm626, %v782
      %v789 = vld [vmem:[%s6] sm:$0xf]
      %v790 = vld [vmem:[%s6 + $0x4] sm:$0xf]
      %v791 = vld [vmem:[%s6 + $0x8] sm:$0xf]
      %v792 = vld [vmem:[%s6 + $0xc] sm:$0xf]
      %v797 = vunpack.c.l.b16 %v789
      %v798 = vunpack.c.l.b16 %v790
      %v799 = vunpack.c.l.b16 %v791
      %v800 = vunpack.c.l.b16 %v792
      %v801 = vpack.c.b16 %v798, %v797
      %v802 = vpack.c.b16 %v800, %v799
      %v804 = vsel %vm729, %v801, 0
      %v807 = vsel %vm729, %v802, 0
      %809 = vmatprep.subr.bf16.mxu0 0
      %810 = vmatpush1.bf16.msra.mxu0 0
      %811 = vmatprep.subr.bf16.mxu0 0
      %812 = vmatpush1.bf16.msra.mxu0 0
      %813 = vmatprep.subr.bf16.mxu0 0
      %814 = vmatpush1.bf16.msra.mxu0 0
      %815 = vmatprep.subr.bf16.mxu0 0
      %816 = vmatpush1.bf16.msra.mxu0 0
      %817 = vmatprep.subr.bf16.mxu0 0
      %818 = vmatpush1.bf16.msra.mxu0 0
      %819 = vmatprep.subr.bf16.mxu0 0
      %820 = vmatpush1.bf16.msra.mxu0 0
      %821 = vmatprep.subr.bf16.mxu0 0
      %822 = vmatpush1.bf16.msra.mxu0 %v726
      %823 = vmatprep.subr.bf16.mxu0 0
      %824 = vmatpush1.bf16.msra.mxu0 %v725
      %825 = vmatprep.subr.bf16.mxu0 0
      %826 = vmatpush2.bf16.msra.mxu0 0
      %827 = vmatprep.subr.bf16.mxu0 0
      %828 = vmatpush2.bf16.msra.mxu0 0
      %829 = vmatprep.subr.bf16.mxu0 0
      %830 = vmatpush2.bf16.msra.mxu0 0
      %831 = vmatprep.subr.bf16.mxu0 0
      %832 = vmatpush2.bf16.msra.mxu0 0
      %833 = vmatprep.subr.bf16.mxu0 0
      %834 = vmatpush2.bf16.msra.mxu0 0
      %835 = vmatprep.subr.bf16.mxu0 0
      %836 = vmatpush2.bf16.msra.mxu0 0
      %837 = vmatprep.subr.bf16.mxu0 0
      %838 = vmatpush2.bf16.msra.mxu0 0
      %839 = vmatprep.subr.bf16.mxu0 0
      %840 = vmatpush2.bf16.msra.mxu0 0
      %841 = vmatprep.mubr.bf16.mxu0 0
      %842 = vmatmul.mubr.bf16.gmra.mxu0 %v804
      %v843 = vpop.f32.mrf.mxu0
      %v844 = vadd.f32 0.0, %v843
      %v845 = vpop.f32.mrf.mxu0
      %v846 = vpop.f32.mrf.mxu0
      %v847 = vadd.f32 0.0, %v846
      %v848 = vpop.f32.mrf.mxu0
      %849 = vmatprep.mubr.bf16.mxu0 0
      %850 = vmatmul.mubr.bf16.gmra.mxu0 %v807
      %v851 = vpop.f32.mrf.mxu0
      %v852 = vadd.f32 0.0, %v851
      %v853 = vpop.f32.mrf.mxu0
      %v854 = vpop.f32.mrf.mxu0
      %v855 = vadd.f32 0.0, %v854
      %v856 = vpop.f32.mrf.mxu0
      %857 = vdwg.mxu0
      %862 = vrot.lane.b32.xlu0 %v844, 3
      %v863 = vpop.permute.xlu0 %862
      %864 = vrot.lane.b32.xlu0 %v847, 3
      %v865 = vpop.permute.xlu0 %864
      %866 = vrot.lane.b32.xlu0 %v852, 3
      %v867 = vpop.permute.xlu0 %866
      %868 = vrot.lane.b32.xlu0 %v855, 3
      %v869 = vpop.permute.xlu0 %868
      %v874 = vadd.f32 %v472, %v863
      %v875 = vadd.f32 %v473, %v865
      %v876 = vadd.f32 %v474, %v867
      %v877 = vadd.f32 %v475, %v869
      %s878 = scalar_lea.vmem %s6, 16
      %v879 = vld [vmem:[%s878] sm:$0xf]
      %v880 = vld [vmem:[%s878 + $0x4] sm:$0xf]
      %v881 = vld [vmem:[%s878 + $0x8] sm:$0xf]
      %v882 = vld [vmem:[%s878 + $0xc] sm:$0xf]
      %v887 = vunpack.c.l.b16 %v879
      %v888 = vunpack.c.l.b16 %v880
      %v889 = vunpack.c.l.b16 %v881
      %v890 = vunpack.c.l.b16 %v882
      %v891 = vpack.c.b16 %v888, %v887
      %v892 = vpack.c.b16 %v890, %v889
      %893 = vrot.lane.b32.xlu0 %v725, 127
      %v894 = vpop.permute.xlu0 %893
      %895 = vrot.lane.b32.xlu0 %v726, 127
      %v896 = vpop.permute.xlu0 %895
      %v900 = vsel %vm729, %v891, 0
      %v903 = vsel %vm729, %v892, 0
      %905 = vmatprep.subr.bf16.mxu0 0
      %906 = vmatpush1.bf16.msra.mxu0 0
      %907 = vmatprep.subr.bf16.mxu0 0
      %908 = vmatpush1.bf16.msra.mxu0 0
      %909 = vmatprep.subr.bf16.mxu0 0
      %910 = vmatpush1.bf16.msra.mxu0 0
      %911 = vmatprep.subr.bf16.mxu0 0
      %912 = vmatpush1.bf16.msra.mxu0 0
      %913 = vmatprep.subr.bf16.mxu0 0
      %914 = vmatpush1.bf16.msra.mxu0 0
      %915 = vmatprep.subr.bf16.mxu0 0
      %916 = vmatpush1.bf16.msra.mxu0 0
      %917 = vmatprep.subr.bf16.mxu0 0
      %918 = vmatpush1.bf16.msra.mxu0 %v896
      %919 = vmatprep.subr.bf16.mxu0 0
      %920 = vmatpush1.bf16.msra.mxu0 %v894
      %921 = vmatprep.subr.bf16.mxu0 0
      %922 = vmatpush2.bf16.msra.mxu0 0
      %923 = vmatprep.subr.bf16.mxu0 0
      %924 = vmatpush2.bf16.msra.mxu0 0
      %925 = vmatprep.subr.bf16.mxu0 0
      %926 = vmatpush2.bf16.msra.mxu0 0
      %927 = vmatprep.subr.bf16.mxu0 0
      %928 = vmatpush2.bf16.msra.mxu0 0
      %929 = vmatprep.subr.bf16.mxu0 0
      %930 = vmatpush2.bf16.msra.mxu0 0
      %931 = vmatprep.subr.bf16.mxu0 0
      %932 = vmatpush2.bf16.msra.mxu0 0
      %933 = vmatprep.subr.bf16.mxu0 0
      %934 = vmatpush2.bf16.msra.mxu0 0
      %935 = vmatprep.subr.bf16.mxu0 0
      %936 = vmatpush2.bf16.msra.mxu0 0
      %937 = vmatprep.mubr.bf16.mxu0 0
      %938 = vmatmul.mubr.bf16.gmra.mxu0 %v900
      %v939 = vpop.f32.mrf.mxu0
      %v940 = vadd.f32 0.0, %v939
      %v941 = vpop.f32.mrf.mxu0
      %v942 = vpop.f32.mrf.mxu0
      %v943 = vadd.f32 0.0, %v942
      %v944 = vpop.f32.mrf.mxu0
      %945 = vmatprep.mubr.bf16.mxu0 0
      %946 = vmatmul.mubr.bf16.gmra.mxu0 %v903
      %v947 = vpop.f32.mrf.mxu0
      %v948 = vadd.f32 0.0, %v947
      %v949 = vpop.f32.mrf.mxu0
      %v950 = vpop.f32.mrf.mxu0
      %v951 = vadd.f32 0.0, %v950
      %v952 = vpop.f32.mrf.mxu0
      %953 = vdwg.mxu0
      %958 = vrot.lane.b32.xlu0 %v940, 3
      %v959 = vpop.permute.xlu0 %958
      %960 = vrot.lane.b32.xlu0 %v943, 3
      %v961 = vpop.permute.xlu0 %960
      %962 = vrot.lane.b32.xlu0 %v948, 3
      %v963 = vpop.permute.xlu0 %962
      %964 = vrot.lane.b32.xlu0 %v951, 3
      %v965 = vpop.permute.xlu0 %964
      %v970 = vadd.f32 %v874, %v959
      %v971 = vadd.f32 %v875, %v961
      %v972 = vadd.f32 %v876, %v963
      %v973 = vadd.f32 %v877, %v965
      %s974 = scalar_lea.vmem %s6, 32
      %v975 = vld [vmem:[%s974] sm:$0xf]
      %v976 = vld [vmem:[%s974 + $0x4] sm:$0xf]
      %v977 = vld [vmem:[%s974 + $0x8] sm:$0xf]
      %v978 = vld [vmem:[%s974 + $0xc] sm:$0xf]
      %v983 = vunpack.c.l.b16 %v975
      %v984 = vunpack.c.l.b16 %v976
      %v985 = vunpack.c.l.b16 %v977
      %v986 = vunpack.c.l.b16 %v978
      %v987 = vpack.c.b16 %v984, %v983
      %v988 = vpack.c.b16 %v986, %v985
      %989 = vrot.lane.b32.xlu0 %v725, 126
      %v990 = vpop.permute.xlu0 %989
      %991 = vrot.lane.b32.xlu0 %v726, 126
      %v992 = vpop.permute.xlu0 %991
      %v996 = vsel %vm729, %v987, 0
      %v999 = vsel %vm729, %v988, 0
      %1001 = vmatprep.subr.bf16.mxu0 0
      %1002 = vmatpush1.bf16.msra.mxu0 0
      %1003 = vmatprep.subr.bf16.mxu0 0
      %1004 = vmatpush1.bf16.msra.mxu0 0
      %1005 = vmatprep.subr.bf16.mxu0 0
      %1006 = vmatpush1.bf16.msra.mxu0 0
      %1007 = vmatprep.subr.bf16.mxu0 0
      %1008 = vmatpush1.bf16.msra.mxu0 0
      %1009 = vmatprep.subr.bf16.mxu0 0
      %1010 = vmatpush1.bf16.msra.mxu0 0
      %1011 = vmatprep.subr.bf16.mxu0 0
      %1012 = vmatpush1.bf16.msra.mxu0 0
      %1013 = vmatprep.subr.bf16.mxu0 0
      %1014 = vmatpush1.bf16.msra.mxu0 %v992
      %1015 = vmatprep.subr.bf16.mxu0 0
      %1016 = vmatpush1.bf16.msra.mxu0 %v990
      %1017 = vmatprep.subr.bf16.mxu0 0
      %1018 = vmatpush2.bf16.msra.mxu0 0
      %1019 = vmatprep.subr.bf16.mxu0 0
      %1020 = vmatpush2.bf16.msra.mxu0 0
      %1021 = vmatprep.subr.bf16.mxu0 0
      %1022 = vmatpush2.bf16.msra.mxu0 0
      %1023 = vmatprep.subr.bf16.mxu0 0
      %1024 = vmatpush2.bf16.msra.mxu0 0
      %1025 = vmatprep.subr.bf16.mxu0 0
      %1026 = vmatpush2.bf16.msra.mxu0 0
      %1027 = vmatprep.subr.bf16.mxu0 0
      %1028 = vmatpush2.bf16.msra.mxu0 0
      %1029 = vmatprep.subr.bf16.mxu0 0
      %1030 = vmatpush2.bf16.msra.mxu0 0
      %1031 = vmatprep.subr.bf16.mxu0 0
      %1032 = vmatpush2.bf16.msra.mxu0 0
      %1033 = vmatprep.mubr.bf16.mxu0 0
      %1034 = vmatmul.mubr.bf16.gmra.mxu0 %v996
      %v1035 = vpop.f32.mrf.mxu0
      %v1036 = vadd.f32 0.0, %v1035
      %v1037 = vpop.f32.mrf.mxu0
      %v1038 = vpop.f32.mrf.mxu0
      %v1039 = vadd.f32 0.0, %v1038
      %v1040 = vpop.f32.mrf.mxu0
      %1041 = vmatprep.mubr.bf16.mxu0 0
      %1042 = vmatmul.mubr.bf16.gmra.mxu0 %v999
      %v1043 = vpop.f32.mrf.mxu0
      %v1044 = vadd.f32 0.0, %v1043
      %v1045 = vpop.f32.mrf.mxu0
      %v1046 = vpop.f32.mrf.mxu0
      %v1047 = vadd.f32 0.0, %v1046
      %v1048 = vpop.f32.mrf.mxu0
      %1049 = vdwg.mxu0
      %1054 = vrot.lane.b32.xlu0 %v1036, 3
      %v1055 = vpop.permute.xlu0 %1054
      %1056 = vrot.lane.b32.xlu0 %v1039, 3
      %v1057 = vpop.permute.xlu0 %1056
      %1058 = vrot.lane.b32.xlu0 %v1044, 3
      %v1059 = vpop.permute.xlu0 %1058
      %1060 = vrot.lane.b32.xlu0 %v1047, 3
      %v1061 = vpop.permute.xlu0 %1060
      %v1066 = vadd.f32 %v970, %v1055
      %v1067 = vadd.f32 %v971, %v1057
      %v1068 = vadd.f32 %v972, %v1059
      %v1069 = vadd.f32 %v973, %v1061
      %s1070 = scalar_lea.vmem %s6, 48
      %v1071 = vld [vmem:[%s1070] sm:$0xf]
      %v1072 = vld [vmem:[%s1070 + $0x4] sm:$0xf]
      %v1073 = vld [vmem:[%s1070 + $0x8] sm:$0xf]
      %v1074 = vld [vmem:[%s1070 + $0xc] sm:$0xf]
      %v1079 = vunpack.c.l.b16 %v1071
      %v1080 = vunpack.c.l.b16 %v1072
      %v1081 = vunpack.c.l.b16 %v1073
      %v1082 = vunpack.c.l.b16 %v1074
      %v1083 = vpack.c.b16 %v1080, %v1079
      %v1084 = vpack.c.b16 %v1082, %v1081
      %1085 = vrot.lane.b32.xlu0 %v725, 124
      %v1086 = vpop.permute.xlu0 %1085
      %1087 = vrot.lane.b32.xlu0 %v726, 124
      %v1088 = vpop.permute.xlu0 %1087
      %v1092 = vsel %vm729, %v1083, 0
      %v1095 = vsel %vm729, %v1084, 0
      %1097 = vmatprep.subr.bf16.mxu0 0
      %1098 = vmatpush1.bf16.msra.mxu0 0
      %1099 = vmatprep.subr.bf16.mxu0 0
      %1100 = vmatpush1.bf16.msra.mxu0 0
      %1101 = vmatprep.subr.bf16.mxu0 0
      %1102 = vmatpush1.bf16.msra.mxu0 0
      %1103 = vmatprep.subr.bf16.mxu0 0
      %1104 = vmatpush1.bf16.msra.mxu0 0
      %1105 = vmatprep.subr.bf16.mxu0 0
      %1106 = vmatpush1.bf16.msra.mxu0 0
      %1107 = vmatprep.subr.bf16.mxu0 0
      %1108 = vmatpush1.bf16.msra.mxu0 0
      %1109 = vmatprep.subr.bf16.mxu0 0
      %1110 = vmatpush1.bf16.msra.mxu0 %v1088
      %1111 = vmatprep.subr.bf16.mxu0 0
      %1112 = vmatpush1.bf16.msra.mxu0 %v1086
      %1113 = vmatprep.subr.bf16.mxu0 0
      %1114 = vmatpush2.bf16.msra.mxu0 0
      %1115 = vmatprep.subr.bf16.mxu0 0
      %1116 = vmatpush2.bf16.msra.mxu0 0
      %1117 = vmatprep.subr.bf16.mxu0 0
      %1118 = vmatpush2.bf16.msra.mxu0 0
      %1119 = vmatprep.subr.bf16.mxu0 0
      %1120 = vmatpush2.bf16.msra.mxu0 0
      %1121 = vmatprep.subr.bf16.mxu0 0
      %1122 = vmatpush2.bf16.msra.mxu0 0
      %1123 = vmatprep.subr.bf16.mxu0 0
      %1124 = vmatpush2.bf16.msra.mxu0 0
      %1125 = vmatprep.subr.bf16.mxu0 0
      %1126 = vmatpush2.bf16.msra.mxu0 0
      %1127 = vmatprep.subr.bf16.mxu0 0
      %1128 = vmatpush2.bf16.msra.mxu0 0
      %1129 = vmatprep.mubr.bf16.mxu0 0
      %1130 = vmatmul.mubr.bf16.gmra.mxu0 %v1092
      %v1131 = vpop.f32.mrf.mxu0
      %v1132 = vadd.f32 0.0, %v1131
      %v1133 = vpop.f32.mrf.mxu0
      %v1134 = vpop.f32.mrf.mxu0
      %v1135 = vadd.f32 0.0, %v1134
      %v1136 = vpop.f32.mrf.mxu0
      %1137 = vmatprep.mubr.bf16.mxu0 0
      %1138 = vmatmul.mubr.bf16.gmra.mxu0 %v1095
      %v1139 = vpop.f32.mrf.mxu0
      %v1140 = vadd.f32 0.0, %v1139
      %v1141 = vpop.f32.mrf.mxu0
      %v1142 = vpop.f32.mrf.mxu0
      %v1143 = vadd.f32 0.0, %v1142
      %v1144 = vpop.f32.mrf.mxu0
      %1145 = vdwg.mxu0
      %1150 = vrot.lane.b32.xlu0 %v1132, 3
      %v1151 = vpop.permute.xlu0 %1150
      %1152 = vrot.lane.b32.xlu0 %v1135, 3
      %v1153 = vpop.permute.xlu0 %1152
      %1154 = vrot.lane.b32.xlu0 %v1140, 3
      %v1155 = vpop.permute.xlu0 %1154
      %1156 = vrot.lane.b32.xlu0 %v1143, 3
      %v1157 = vpop.permute.xlu0 %1156
      %v1162 = vadd.f32 %v1066, %v1151
      %v1163 = vadd.f32 %v1067, %v1153
      %v1164 = vadd.f32 %v1068, %v1155
      %v1165 = vadd.f32 %v1069, %v1157
      %s1166 = scalar_lea.vmem %s6, 64
      %v1167 = vld [vmem:[%s1166] sm:$0xf]
      %v1168 = vld [vmem:[%s1166 + $0x4] sm:$0xf]
      %v1169 = vld [vmem:[%s1166 + $0x8] sm:$0xf]
      %v1170 = vld [vmem:[%s1166 + $0xc] sm:$0xf]
      %v1175 = vunpack.c.l.b16 %v1167
      %v1176 = vunpack.c.l.b16 %v1168
      %v1177 = vunpack.c.l.b16 %v1169
      %v1178 = vunpack.c.l.b16 %v1170
      %v1179 = vpack.c.b16 %v1176, %v1175
      %v1180 = vpack.c.b16 %v1178, %v1177
      %1181 = vrot.lane.b32.xlu0 %v725, 123
      %v1182 = vpop.permute.xlu0 %1181
      %1183 = vrot.lane.b32.xlu0 %v726, 123
      %v1184 = vpop.permute.xlu0 %1183
      %v1188 = vsel %vm729, %v1179, 0
      %v1191 = vsel %vm729, %v1180, 0
      %1193 = vmatprep.subr.bf16.mxu0 0
      %1194 = vmatpush1.bf16.msra.mxu0 0
      %1195 = vmatprep.subr.bf16.mxu0 0
      %1196 = vmatpush1.bf16.msra.mxu0 0
      %1197 = vmatprep.subr.bf16.mxu0 0
      %1198 = vmatpush1.bf16.msra.mxu0 0
      %1199 = vmatprep.subr.bf16.mxu0 0
      %1200 = vmatpush1.bf16.msra.mxu0 0
      %1201 = vmatprep.subr.bf16.mxu0 0
      %1202 = vmatpush1.bf16.msra.mxu0 0
      %1203 = vmatprep.subr.bf16.mxu0 0
      %1204 = vmatpush1.bf16.msra.mxu0 0
      %1205 = vmatprep.subr.bf16.mxu0 0
      %1206 = vmatpush1.bf16.msra.mxu0 %v1184
      %1207 = vmatprep.subr.bf16.mxu0 0
      %1208 = vmatpush1.bf16.msra.mxu0 %v1182
      %1209 = vmatprep.subr.bf16.mxu0 0
      %1210 = vmatpush2.bf16.msra.mxu0 0
      %1211 = vmatprep.subr.bf16.mxu0 0
      %1212 = vmatpush2.bf16.msra.mxu0 0
      %1213 = vmatprep.subr.bf16.mxu0 0
      %1214 = vmatpush2.bf16.msra.mxu0 0
      %1215 = vmatprep.subr.bf16.mxu0 0
      %1216 = vmatpush2.bf16.msra.mxu0 0
      %1217 = vmatprep.subr.bf16.mxu0 0
      %1218 = vmatpush2.bf16.msra.mxu0 0
      %1219 = vmatprep.subr.bf16.mxu0 0
      %1220 = vmatpush2.bf16.msra.mxu0 0
      %1221 = vmatprep.subr.bf16.mxu0 0
      %1222 = vmatpush2.bf16.msra.mxu0 0
      %1223 = vmatprep.subr.bf16.mxu0 0
      %1224 = vmatpush2.bf16.msra.mxu0 0
      %1225 = vmatprep.mubr.bf16.mxu0 0
      %1226 = vmatmul.mubr.bf16.gmra.mxu0 %v1188
      %v1227 = vpop.f32.mrf.mxu0
      %v1228 = vadd.f32 0.0, %v1227
      %v1229 = vpop.f32.mrf.mxu0
      %v1230 = vpop.f32.mrf.mxu0
      %v1231 = vadd.f32 0.0, %v1230
      %v1232 = vpop.f32.mrf.mxu0
      %1233 = vmatprep.mubr.bf16.mxu0 0
      %1234 = vmatmul.mubr.bf16.gmra.mxu0 %v1191
      %v1235 = vpop.f32.mrf.mxu0
      %v1236 = vadd.f32 0.0, %v1235
      %v1237 = vpop.f32.mrf.mxu0
      %v1238 = vpop.f32.mrf.mxu0
      %v1239 = vadd.f32 0.0, %v1238
      %v1240 = vpop.f32.mrf.mxu0
      %1241 = vdwg.mxu0
      %1246 = vrot.lane.b32.xlu0 %v1228, 3
      %v1247 = vpop.permute.xlu0 %1246
      %1248 = vrot.lane.b32.xlu0 %v1231, 3
      %v1249 = vpop.permute.xlu0 %1248
      %1250 = vrot.lane.b32.xlu0 %v1236, 3
      %v1251 = vpop.permute.xlu0 %1250
      %1252 = vrot.lane.b32.xlu0 %v1239, 3
      %v1253 = vpop.permute.xlu0 %1252
      %v1258 = vadd.f32 %v1162, %v1247
      %v1259 = vadd.f32 %v1163, %v1249
      %v1260 = vadd.f32 %v1164, %v1251
      %v1261 = vadd.f32 %v1165, %v1253
      %s1262 = scalar_lea.vmem %s6, 80
      %v1263 = vld [vmem:[%s1262] sm:$0xf]
      %v1264 = vld [vmem:[%s1262 + $0x4] sm:$0xf]
      %v1265 = vld [vmem:[%s1262 + $0x8] sm:$0xf]
      %v1266 = vld [vmem:[%s1262 + $0xc] sm:$0xf]
      %v1271 = vunpack.c.l.b16 %v1263
      %v1272 = vunpack.c.l.b16 %v1264
      %v1273 = vunpack.c.l.b16 %v1265
      %v1274 = vunpack.c.l.b16 %v1266
      %v1275 = vpack.c.b16 %v1272, %v1271
      %v1276 = vpack.c.b16 %v1274, %v1273
      %1277 = vrot.lane.b32.xlu0 %v725, 122
      %v1278 = vpop.permute.xlu0 %1277
      %1279 = vrot.lane.b32.xlu0 %v726, 122
      %v1280 = vpop.permute.xlu0 %1279
      %v1284 = vsel %vm729, %v1275, 0
      %v1287 = vsel %vm729, %v1276, 0
      %1289 = vmatprep.subr.bf16.mxu0 0
      %1290 = vmatpush1.bf16.msra.mxu0 0
      %1291 = vmatprep.subr.bf16.mxu0 0
      %1292 = vmatpush1.bf16.msra.mxu0 0
      %1293 = vmatprep.subr.bf16.mxu0 0
      %1294 = vmatpush1.bf16.msra.mxu0 0
      %1295 = vmatprep.subr.bf16.mxu0 0
      %1296 = vmatpush1.bf16.msra.mxu0 0
      %1297 = vmatprep.subr.bf16.mxu0 0
      %1298 = vmatpush1.bf16.msra.mxu0 0
      %1299 = vmatprep.subr.bf16.mxu0 0
      %1300 = vmatpush1.bf16.msra.mxu0 0
      %1301 = vmatprep.subr.bf16.mxu0 0
      %1302 = vmatpush1.bf16.msra.mxu0 %v1280
      %1303 = vmatprep.subr.bf16.mxu0 0
      %1304 = vmatpush1.bf16.msra.mxu0 %v1278
      %1305 = vmatprep.subr.bf16.mxu0 0
      %1306 = vmatpush2.bf16.msra.mxu0 0
      %1307 = vmatprep.subr.bf16.mxu0 0
      %1308 = vmatpush2.bf16.msra.mxu0 0
      %1309 = vmatprep.subr.bf16.mxu0 0
      %1310 = vmatpush2.bf16.msra.mxu0 0
      %1311 = vmatprep.subr.bf16.mxu0 0
      %1312 = vmatpush2.bf16.msra.mxu0 0
      %1313 = vmatprep.subr.bf16.mxu0 0
      %1314 = vmatpush2.bf16.msra.mxu0 0
      %1315 = vmatprep.subr.bf16.mxu0 0
      %1316 = vmatpush2.bf16.msra.mxu0 0
      %1317 = vmatprep.subr.bf16.mxu0 0
      %1318 = vmatpush2.bf16.msra.mxu0 0
      %1319 = vmatprep.subr.bf16.mxu0 0
      %1320 = vmatpush2.bf16.msra.mxu0 0
      %1321 = vmatprep.mubr.bf16.mxu0 0
      %1322 = vmatmul.mubr.bf16.gmra.mxu0 %v1284
      %v1323 = vpop.f32.mrf.mxu0
      %v1324 = vadd.f32 0.0, %v1323
      %v1325 = vpop.f32.mrf.mxu0
      %v1326 = vpop.f32.mrf.mxu0
      %v1327 = vadd.f32 0.0, %v1326
      %v1328 = vpop.f32.mrf.mxu0
      %1329 = vmatprep.mubr.bf16.mxu0 0
      %1330 = vmatmul.mubr.bf16.gmra.mxu0 %v1287
      %v1331 = vpop.f32.mrf.mxu0
      %v1332 = vadd.f32 0.0, %v1331
      %v1333 = vpop.f32.mrf.mxu0
      %v1334 = vpop.f32.mrf.mxu0
      %v1335 = vadd.f32 0.0, %v1334
      %v1336 = vpop.f32.mrf.mxu0
      %1337 = vdwg.mxu0
      %1342 = vrot.lane.b32.xlu0 %v1324, 3
      %v1343 = vpop.permute.xlu0 %1342
      %1344 = vrot.lane.b32.xlu0 %v1327, 3
      %v1345 = vpop.permute.xlu0 %1344
      %1346 = vrot.lane.b32.xlu0 %v1332, 3
      %v1347 = vpop.permute.xlu0 %1346
      %1348 = vrot.lane.b32.xlu0 %v1335, 3
      %v1349 = vpop.permute.xlu0 %1348
      %v1354 = vadd.f32 %v1258, %v1343
      %v1355 = vadd.f32 %v1259, %v1345
      %v1356 = vadd.f32 %v1260, %v1347
      %v1357 = vadd.f32 %v1261, %v1349
      %s1358 = scalar_lea.vmem %s6, 96
      %v1359 = vld [vmem:[%s1358] sm:$0xf]
      %v1360 = vld [vmem:[%s1358 + $0x4] sm:$0xf]
      %v1361 = vld [vmem:[%s1358 + $0x8] sm:$0xf]
      %v1362 = vld [vmem:[%s1358 + $0xc] sm:$0xf]
      %v1367 = vunpack.c.l.b16 %v1359
      %v1368 = vunpack.c.l.b16 %v1360
      %v1369 = vunpack.c.l.b16 %v1361
      %v1370 = vunpack.c.l.b16 %v1362
      %v1371 = vpack.c.b16 %v1368, %v1367
      %v1372 = vpack.c.b16 %v1370, %v1369
      %1373 = vrot.lane.b32.xlu0 %v725, 120
      %v1374 = vpop.permute.xlu0 %1373
      %1375 = vrot.lane.b32.xlu0 %v726, 120
      %v1376 = vpop.permute.xlu0 %1375
      %v1380 = vsel %vm729, %v1371, 0
      %v1383 = vsel %vm729, %v1372, 0
      %1385 = vmatprep.subr.bf16.mxu0 0
      %1386 = vmatpush1.bf16.msra.mxu0 0
      %1387 = vmatprep.subr.bf16.mxu0 0
      %1388 = vmatpush1.bf16.msra.mxu0 0
      %1389 = vmatprep.subr.bf16.mxu0 0
      %1390 = vmatpush1.bf16.msra.mxu0 0
      %1391 = vmatprep.subr.bf16.mxu0 0
      %1392 = vmatpush1.bf16.msra.mxu0 0
      %1393 = vmatprep.subr.bf16.mxu0 0
      %1394 = vmatpush1.bf16.msra.mxu0 0
      %1395 = vmatprep.subr.bf16.mxu0 0
      %1396 = vmatpush1.bf16.msra.mxu0 0
      %1397 = vmatprep.subr.bf16.mxu0 0
      %1398 = vmatpush1.bf16.msra.mxu0 %v1376
      %1399 = vmatprep.subr.bf16.mxu0 0
      %1400 = vmatpush1.bf16.msra.mxu0 %v1374
      %1401 = vmatprep.subr.bf16.mxu0 0
      %1402 = vmatpush2.bf16.msra.mxu0 0
      %1403 = vmatprep.subr.bf16.mxu0 0
      %1404 = vmatpush2.bf16.msra.mxu0 0
      %1405 = vmatprep.subr.bf16.mxu0 0
      %1406 = vmatpush2.bf16.msra.mxu0 0
      %1407 = vmatprep.subr.bf16.mxu0 0
      %1408 = vmatpush2.bf16.msra.mxu0 0
      %1409 = vmatprep.subr.bf16.mxu0 0
      %1410 = vmatpush2.bf16.msra.mxu0 0
      %1411 = vmatprep.subr.bf16.mxu0 0
      %1412 = vmatpush2.bf16.msra.mxu0 0
      %1413 = vmatprep.subr.bf16.mxu0 0
      %1414 = vmatpush2.bf16.msra.mxu0 0
      %1415 = vmatprep.subr.bf16.mxu0 0
      %1416 = vmatpush2.bf16.msra.mxu0 0
      %1417 = vmatprep.mubr.bf16.mxu0 0
      %1418 = vmatmul.mubr.bf16.gmra.mxu0 %v1380
      %v1419 = vpop.f32.mrf.mxu0
      %v1420 = vadd.f32 0.0, %v1419
      %v1421 = vpop.f32.mrf.mxu0
      %v1422 = vpop.f32.mrf.mxu0
      %v1423 = vadd.f32 0.0, %v1422
      %v1424 = vpop.f32.mrf.mxu0
      %1425 = vmatprep.mubr.bf16.mxu0 0
      %1426 = vmatmul.mubr.bf16.gmra.mxu0 %v1383
      %v1427 = vpop.f32.mrf.mxu0
      %v1428 = vadd.f32 0.0, %v1427
      %v1429 = vpop.f32.mrf.mxu0
      %v1430 = vpop.f32.mrf.mxu0
      %v1431 = vadd.f32 0.0, %v1430
      %v1432 = vpop.f32.mrf.mxu0
      %1433 = vdwg.mxu0
      %1438 = vrot.lane.b32.xlu0 %v1420, 3
      %v1439 = vpop.permute.xlu0 %1438
      %1440 = vrot.lane.b32.xlu0 %v1423, 3
      %v1441 = vpop.permute.xlu0 %1440
      %1442 = vrot.lane.b32.xlu0 %v1428, 3
      %v1443 = vpop.permute.xlu0 %1442
      %1444 = vrot.lane.b32.xlu0 %v1431, 3
      %v1445 = vpop.permute.xlu0 %1444
      %v1450 = vadd.f32 %v1354, %v1439
      %v1451 = vadd.f32 %v1355, %v1441
      %v1452 = vadd.f32 %v1356, %v1443
      %v1453 = vadd.f32 %v1357, %v1445
      %s1454 = scalar_lea.vmem %s6, 112
      %v1455 = vld [vmem:[%s1454] sm:$0xf]
      %v1456 = vld [vmem:[%s1454 + $0x4] sm:$0xf]
      %v1457 = vld [vmem:[%s1454 + $0x8] sm:$0xf]
      %v1458 = vld [vmem:[%s1454 + $0xc] sm:$0xf]
      %v1463 = vunpack.c.l.b16 %v1455
      %v1464 = vunpack.c.l.b16 %v1456
      %v1465 = vunpack.c.l.b16 %v1457
      %v1466 = vunpack.c.l.b16 %v1458
      %v1467 = vpack.c.b16 %v1464, %v1463
      %v1468 = vpack.c.b16 %v1466, %v1465
      %1469 = vrot.lane.b32.xlu0 %v725, 119
      %v1470 = vpop.permute.xlu0 %1469
      %1471 = vrot.lane.b32.xlu0 %v726, 119
      %v1472 = vpop.permute.xlu0 %1471
      %v1476 = vsel %vm729, %v1467, 0
      %v1479 = vsel %vm729, %v1468, 0
      %1481 = vmatprep.subr.bf16.mxu0 0
      %1482 = vmatpush1.bf16.msra.mxu0 0
      %1483 = vmatprep.subr.bf16.mxu0 0
      %1484 = vmatpush1.bf16.msra.mxu0 0
      %1485 = vmatprep.subr.bf16.mxu0 0
      %1486 = vmatpush1.bf16.msra.mxu0 0
      %1487 = vmatprep.subr.bf16.mxu0 0
      %1488 = vmatpush1.bf16.msra.mxu0 0
      %1489 = vmatprep.subr.bf16.mxu0 0
      %1490 = vmatpush1.bf16.msra.mxu0 0
      %1491 = vmatprep.subr.bf16.mxu0 0
      %1492 = vmatpush1.bf16.msra.mxu0 0
      %1493 = vmatprep.subr.bf16.mxu0 0
      %1494 = vmatpush1.bf16.msra.mxu0 %v1472
      %1495 = vmatprep.subr.bf16.mxu0 0
      %1496 = vmatpush1.bf16.msra.mxu0 %v1470
      %1497 = vmatprep.subr.bf16.mxu0 0
      %1498 = vmatpush2.bf16.msra.mxu0 0
      %1499 = vmatprep.subr.bf16.mxu0 0
      %1500 = vmatpush2.bf16.msra.mxu0 0
      %1501 = vmatprep.subr.bf16.mxu0 0
      %1502 = vmatpush2.bf16.msra.mxu0 0
      %1503 = vmatprep.subr.bf16.mxu0 0
      %1504 = vmatpush2.bf16.msra.mxu0 0
      %1505 = vmatprep.subr.bf16.mxu0 0
      %1506 = vmatpush2.bf16.msra.mxu0 0
      %1507 = vmatprep.subr.bf16.mxu0 0
      %1508 = vmatpush2.bf16.msra.mxu0 0
      %1509 = vmatprep.subr.bf16.mxu0 0
      %1510 = vmatpush2.bf16.msra.mxu0 0
      %1511 = vmatprep.subr.bf16.mxu0 0
      %1512 = vmatpush2.bf16.msra.mxu0 0
      %1513 = vmatprep.mubr.bf16.mxu0 0
      %1514 = vmatmul.mubr.bf16.gmra.mxu0 %v1476
      %v1515 = vpop.f32.mrf.mxu0
      %v1516 = vadd.f32 0.0, %v1515
      %v1517 = vpop.f32.mrf.mxu0
      %v1518 = vpop.f32.mrf.mxu0
      %v1519 = vadd.f32 0.0, %v1518
      %v1520 = vpop.f32.mrf.mxu0
      %1521 = vmatprep.mubr.bf16.mxu0 0
      %1522 = vmatmul.mubr.bf16.gmra.mxu0 %v1479
      %v1523 = vpop.f32.mrf.mxu0
      %v1524 = vadd.f32 0.0, %v1523
      %v1525 = vpop.f32.mrf.mxu0
      %v1526 = vpop.f32.mrf.mxu0
      %v1527 = vadd.f32 0.0, %v1526
      %v1528 = vpop.f32.mrf.mxu0
      %1529 = vdwg.mxu0
      %1534 = vrot.lane.b32.xlu0 %v1516, 3
      %v1535 = vpop.permute.xlu0 %1534
      %1536 = vrot.lane.b32.xlu0 %v1519, 3
      %v1537 = vpop.permute.xlu0 %1536
      %1538 = vrot.lane.b32.xlu0 %v1524, 3
      %v1539 = vpop.permute.xlu0 %1538
      %1540 = vrot.lane.b32.xlu0 %v1527, 3
      %v1541 = vpop.permute.xlu0 %1540
      %v1546 = vadd.f32 %v1450, %v1535
      %v1547 = vadd.f32 %v1451, %v1537
      %v1548 = vadd.f32 %v1452, %v1539
      %v1549 = vadd.f32 %v1453, %v1541
      %s1550 = scalar_lea.vmem %s6, 128
      %v1551 = vld [vmem:[%s1550] sm:$0xf]
      %v1552 = vld [vmem:[%s1550 + $0x4] sm:$0xf]
      %v1553 = vld [vmem:[%s1550 + $0x8] sm:$0xf]
      %v1554 = vld [vmem:[%s1550 + $0xc] sm:$0xf]
      %v1559 = vunpack.c.l.b16 %v1551
      %v1560 = vunpack.c.l.b16 %v1552
      %v1561 = vunpack.c.l.b16 %v1553
      %v1562 = vunpack.c.l.b16 %v1554
      %v1563 = vpack.c.b16 %v1560, %v1559
      %v1564 = vpack.c.b16 %v1562, %v1561
      %1565 = vrot.lane.b32.xlu0 %v725, 118
      %v1566 = vpop.permute.xlu0 %1565
      %1567 = vrot.lane.b32.xlu0 %v726, 118
      %v1568 = vpop.permute.xlu0 %1567
      %v1572 = vsel %vm729, %v1563, 0
      %v1575 = vsel %vm729, %v1564, 0
      %1577 = vmatprep.subr.bf16.mxu0 0
      %1578 = vmatpush1.bf16.msra.mxu0 0
      %1579 = vmatprep.subr.bf16.mxu0 0
      %1580 = vmatpush1.bf16.msra.mxu0 0
      %1581 = vmatprep.subr.bf16.mxu0 0
      %1582 = vmatpush1.bf16.msra.mxu0 0
      %1583 = vmatprep.subr.bf16.mxu0 0
      %1584 = vmatpush1.bf16.msra.mxu0 0
      %1585 = vmatprep.subr.bf16.mxu0 0
      %1586 = vmatpush1.bf16.msra.mxu0 0
      %1587 = vmatprep.subr.bf16.mxu0 0
      %1588 = vmatpush1.bf16.msra.mxu0 0
      %1589 = vmatprep.subr.bf16.mxu0 0
      %1590 = vmatpush1.bf16.msra.mxu0 %v1568
      %1591 = vmatprep.subr.bf16.mxu0 0
      %1592 = vmatpush1.bf16.msra.mxu0 %v1566
      %1593 = vmatprep.subr.bf16.mxu0 0
      %1594 = vmatpush2.bf16.msra.mxu0 0
      %1595 = vmatprep.subr.bf16.mxu0 0
      %1596 = vmatpush2.bf16.msra.mxu0 0
      %1597 = vmatprep.subr.bf16.mxu0 0
      %1598 = vmatpush2.bf16.msra.mxu0 0
      %1599 = vmatprep.subr.bf16.mxu0 0
      %1600 = vmatpush2.bf16.msra.mxu0 0
      %1601 = vmatprep.subr.bf16.mxu0 0
      %1602 = vmatpush2.bf16.msra.mxu0 0
      %1603 = vmatprep.subr.bf16.mxu0 0
      %1604 = vmatpush2.bf16.msra.mxu0 0
      %1605 = vmatprep.subr.bf16.mxu0 0
      %1606 = vmatpush2.bf16.msra.mxu0 0
      %1607 = vmatprep.subr.bf16.mxu0 0
      %1608 = vmatpush2.bf16.msra.mxu0 0
      %1609 = vmatprep.mubr.bf16.mxu0 0
      %1610 = vmatmul.mubr.bf16.gmra.mxu0 %v1572
      %v1611 = vpop.f32.mrf.mxu0
      %v1612 = vadd.f32 0.0, %v1611
      %v1613 = vpop.f32.mrf.mxu0
      %v1614 = vpop.f32.mrf.mxu0
      %v1615 = vadd.f32 0.0, %v1614
      %v1616 = vpop.f32.mrf.mxu0
      %1617 = vmatprep.mubr.bf16.mxu0 0
      %1618 = vmatmul.mubr.bf16.gmra.mxu0 %v1575
      %v1619 = vpop.f32.mrf.mxu0
      %v1620 = vadd.f32 0.0, %v1619
      %v1621 = vpop.f32.mrf.mxu0
      %v1622 = vpop.f32.mrf.mxu0
      %v1623 = vadd.f32 0.0, %v1622
      %v1624 = vpop.f32.mrf.mxu0
      %1625 = vdwg.mxu0
      %1630 = vrot.lane.b32.xlu0 %v1612, 3
      %v1631 = vpop.permute.xlu0 %1630
      %1632 = vrot.lane.b32.xlu0 %v1615, 3
      %v1633 = vpop.permute.xlu0 %1632
      %1634 = vrot.lane.b32.xlu0 %v1620, 3
      %v1635 = vpop.permute.xlu0 %1634
      %1636 = vrot.lane.b32.xlu0 %v1623, 3
      %v1637 = vpop.permute.xlu0 %1636
      %v1642 = vadd.f32 %v1546, %v1631
      %v1643 = vadd.f32 %v1547, %v1633
      %v1644 = vadd.f32 %v1548, %v1635
      %v1645 = vadd.f32 %v1549, %v1637
      %1650 = vrot.lane.b32.xlu0 %v1642, 125
      %v1651 = vpop.permute.xlu0 %1650
      %1652 = vrot.lane.b32.xlu0 %v1643, 125
      %v1653 = vpop.permute.xlu0 %1652
      %1654 = vrot.lane.b32.xlu0 %v1644, 125
      %v1655 = vpop.permute.xlu0 %1654
      %1656 = vrot.lane.b32.xlu0 %v1645, 125
      %v1657 = vpop.permute.xlu0 %1656
      %vm1662 = vcmask 7168
      %1663 = vst.msk [vmem:[%s463] sm:$0xff] %vm1662, %v1651
      %1664 = vst.msk [vmem:[%s463 + $0x8] sm:$0xff] %vm1662, %v1653
      %1665 = vst.msk [vmem:[%s463 + $0x10] sm:$0xff] %vm1662, %v1655
      %1666 = vst.msk [vmem:[%s463 + $0x18] sm:$0xff] %vm1662, %v1657
      %p1667 = scmp.lt.s32.totalorder %s23, 1
      %s1668 = scalar_select %p1667, %s23, 1
      %s1669 = smul.addr %s1668, 8
      %s1670 = smul.addr %s1669, 8
      %s1671 = scalar_lea.vmem %s8, %s1670
      %p1672 = scmp.lt.s32.totalorder %s23, 1
      %s1673 = scalar_select %p1672, %s23, 1
      %s1674 = smul.addr %s1673, 4
      %s1675 = smul.addr %s1674, 8
      %s1676 = scalar_lea.vmem %s9, %s1675
      %p1677 = scmp.lt.s32.totalorder %s23, 1
      %s1678 = scalar_select %p1677, %s23, 1
      %s1679 = smul.addr %s1678, 4
      %s1680 = smul.addr %s1679, 8
      %s1681 = scalar_lea.vmem %s10, %s1680
      %p1682 = scmp.lt.s32.totalorder %s23, 1
      %s1683 = scalar_select %p1682, %s23, 1
      %s1684 = smul.addr %s1683, 4
      %s1685 = smul.addr %s1684, 8
      %s1686 = scalar_lea.vmem %s11, %s1685
      // Predicated region
      $region53: #{backbone_base_forward.1} parent=51 // pred_check
        %p1687 = pneg %p224
      $region54: #{backbone_base_forward.1} parent=51 // pred_check_branch
        %1689 = sbr.rel (%p1687) target = $region56
      $region55: #{backbone_base_forward.1} parent=51 // pred_region
        _
      $region56: #{backbone_base_forward.1} parent=51 // pred_fallthru
        _
      // Predicated region
      $region57: #{backbone_base_forward.1} parent=51 // pred_check
        %p1690 = pneg %p250
      $region58: #{backbone_base_forward.1} parent=51 // pred_check_branch
        %1692 = sbr.rel (%p1690) target = $region60
      $region59: #{backbone_base_forward.1} parent=51 // pred_region
        _
      $region60: #{backbone_base_forward.1} parent=51 // pred_fallthru
        _
      // Predicated region
      $region61: #{backbone_base_forward.1} parent=51 // pred_check
        %p1693 = pneg %p276
      $region62: #{backbone_base_forward.1} parent=51 // pred_check_branch
        %1695 = sbr.rel (%p1693) target = $region64
      $region63: #{backbone_base_forward.1} parent=51 // pred_region
        _
      $region64: #{backbone_base_forward.1} parent=51 // pred_fallthru
        _
      // Predicated region
      $region65: #{backbone_base_forward.1} parent=51 // pred_check
        %p1696 = pneg %p302
      $region66: #{backbone_base_forward.1} parent=51 // pred_check_branch
        %1698 = sbr.rel (%p1696) target = $region68
      $region67: #{backbone_base_forward.1} parent=51 // pred_region
        _
      $region68: #{backbone_base_forward.1} parent=51 // pred_fallthru
        _
    $region52: #{backbone_base_forward.1} parent=5 // pred_fallthru
      _
    %p1699 = scmp.le.s32.totalorder 2, %s18
    // Predicated region
    $region69: #{backbone_base_forward.1} parent=5 // pred_check
      %p1700 = pneg %p1699
    $region70: #{backbone_base_forward.1} parent=5 // pred_check_branch
      %1702 = sbr.rel (%p1700) target = $region72
    $region71: #{backbone_base_forward.1} parent=5 // pred_region
      %s1703 = ssub.s32 %s18, 2
      // Predicated region
      $region73: #{backbone_base_forward.1} parent=71 // pred_check
        %p1704 = pneg %p230
      $region74: #{backbone_base_forward.1} parent=71 // pred_check_branch
        %1706 = sbr.rel (%p1704) target = $region76
      $region75: #{backbone_base_forward.1} parent=71 // pred_region
        %p1707 = scmp.lt.s32.totalorder %s24, 1
        %s1708 = scalar_select %p1707, %s24, 1
        %s1709 = smul.addr %s1708, 8
        %s1710 = smul.addr %s1709, 8
        %s1711 = scalar_lea.vmem %s8, %s1710
      $region76: #{backbone_base_forward.1} parent=71 // pred_fallthru
        _
      // Predicated region
      $region77: #{backbone_base_forward.1} parent=71 // pred_check
        %p1712 = pneg %p256
      $region78: #{backbone_base_forward.1} parent=71 // pred_check_branch
        %1714 = sbr.rel (%p1712) target = $region80
      $region79: #{backbone_base_forward.1} parent=71 // pred_region
        %p1715 = scmp.lt.s32.totalorder %s24, 1
        %s1716 = scalar_select %p1715, %s24, 1
        %s1717 = smul.addr %s1716, 4
        %s1718 = smul.addr %s1717, 8
        %s1719 = scalar_lea.vmem %s9, %s1718
      $region80: #{backbone_base_forward.1} parent=71 // pred_fallthru
        _
      // Predicated region
      $region81: #{backbone_base_forward.1} parent=71 // pred_check
        %p1720 = pneg %p282
      $region82: #{backbone_base_forward.1} parent=71 // pred_check_branch
        %1722 = sbr.rel (%p1720) target = $region84
      $region83: #{backbone_base_forward.1} parent=71 // pred_region
        %p1723 = scmp.lt.s32.totalorder %s24, 1
        %s1724 = scalar_select %p1723, %s24, 1
        %s1725 = smul.addr %s1724, 4
        %s1726 = smul.addr %s1725, 8
        %s1727 = scalar_lea.vmem %s10, %s1726
      $region84: #{backbone_base_forward.1} parent=71 // pred_fallthru
        _
      // Predicated region
      $region85: #{backbone_base_forward.1} parent=71 // pred_check
        %p1728 = pneg %p308
      $region86: #{backbone_base_forward.1} parent=71 // pred_check_branch
        %1730 = sbr.rel (%p1728) target = $region88
      $region87: #{backbone_base_forward.1} parent=71 // pred_region
        %p1731 = scmp.lt.s32.totalorder %s24, 1
        %s1732 = scalar_select %p1731, %s24, 1
        %s1733 = smul.addr %s1732, 4
        %s1734 = smul.addr %s1733, 8
        %s1735 = scalar_lea.vmem %s11, %s1734
      $region88: #{backbone_base_forward.1} parent=71 // pred_fallthru
        _
    $region72: #{backbone_base_forward.1} parent=5 // pred_fallthru
      _
  $region6: #{backbone_base_forward.1} parent=0 // loop_footer
    %s22 = sadd.s32 1, %s18
  $region7: #{backbone_base_forward.1} parent=0 // loop_footer_branch
    %17 = sbr.rel target = $region3
  $region8: #{backbone_base_forward.1} parent=0 // loop_exit
    _

</llo_original>
